<compile_context>
chip_gen: v7x
topology: tpu7x:2x2x1
jax: 0.10.0
libtpu: 0.0.40
codegen_flags: <defaults>
</compile_context>

<pallas_src>
import functools

import jax
import jax.numpy as jnp
from jax.experimental import pallas as pl
from jax.experimental.pallas import tpu as pltpu


def _linear_kernel(x_ref, w_ref, b_ref, o_ref, acc_ref, *, f_total, tk):
    # x_ref: (tm, tk) VMEM   w_ref: (tk, 1) VMEM   b_ref: (1,) SMEM
    # o_ref: (tm, 1) VMEM    acc_ref: (tm, 1) f32 VMEM scratch
    k = pl.program_id(1)

    @pl.when(k == 0)
    def _init():
        acc_ref[...] = jnp.zeros_like(acc_ref)

    x = x_ref[...]
    w = w_ref[...]
    if tk < f_total:
        # Ragged reduction tail: zero the unspecified padding columns so they
        # can never contaminate the dot (cheap VPU filler hidden under DMA).
        valid = f_total - k * tk
        col = jax.lax.broadcasted_iota(jnp.int32, x.shape, 1)
        x = jnp.where(col < valid, x, 0.0)
        row = jax.lax.broadcasted_iota(jnp.int32, w.shape, 0)
        w = jnp.where(row < valid, w, 0.0)

    acc_ref[...] += jnp.dot(x, w, preferred_element_type=jnp.float32)

    @pl.when(k == pl.num_programs(1) - 1)
    def _finalize():
        o_ref[...] = (acc_ref[...] + b_ref[0]).astype(o_ref.dtype)


def _round_up(v, m):
    return ((v + m - 1) // m) * m


def _pick_tiles(n, f, itemsize, x_bytes_per_buffer,
                max_rows_per_tile=None, max_feat_per_tile=None):
    """Byte-budgeted (tm, tk); no row floor that could blow v7x's 64 MiB VMEM."""
    # Reduction tile: whole F if even a minimal 8-row slab fits one buffer,
    # otherwise tile F in lane-aligned chunks (second "arbitrary" grid axis).
    if 8 * f * itemsize <= x_bytes_per_buffer:
        tk = f
    else:
        tk = 8192
    if max_feat_per_tile is not None:
        tk = min(tk, max_feat_per_tile)
    if tk != f:
        tk = max(128, (tk // 128) * 128)      # lane tiling for partial F blocks

    # Batch tile: largest aligned row count whose x block fits one buffer.
    tm = x_bytes_per_buffer // (tk * itemsize)
    if tm >= 128:
        tm = (tm // 128) * 128
    else:
        tm = max(8, (tm // 8) * 8)
    if max_rows_per_tile is not None:
        tm = min(tm, max(8, (max_rows_per_tile // 8) * 8))
    if _round_up(n, 8) <= tm:
        tm = _round_up(n, 8)                  # whole batch in a single block
    return tm, tk


def predict_forward(x, w, b, *,
                    min_rows_for_kernel=2048,
                    x_bytes_per_buffer=8 << 20,
                    max_rows_per_tile=None,
                    max_feat_per_tile=None,
                    force_pallas=False):
    """x: (N, F) f32, w: (1, F) f32 (PyTorch nn.Linear weight), b: (1,) f32 -> (N, 1)."""
    N, F = x.shape
    assert w.shape == (1, F) and b.shape == (1,)
    w_col = jnp.reshape(w, (F, 1))            # tiny layout plumbing (F*4 bytes)

    # Tiny batches: the pallas_call fixed cost dominates; plain XLA is faster.
    if not force_pallas and N < min_rows_for_kernel:
        return x @ w_col + b

    itemsize = x.dtype.itemsize
    tm, tk = _pick_tiles(N, F, itemsize, x_bytes_per_buffer,
                         max_rows_per_tile, max_feat_per_tile)
    n_tiles = pl.cdiv(N, tm)
    k_tiles = pl.cdiv(F, tk)

    # Explicit VMEM budget (defaults stay ~25 MiB: safe on v7x's 64 MiB too).
    vmem_limit = int(2 * tm * tk * itemsize      # x double buffer
                     + 2 * tk * itemsize         # w_col double buffer
                     + 2 * tm * itemsize         # out double buffer
                     + tm * 4                    # f32 accumulator
                     ) + (8 << 20)               # compiler headroom
    vmem_limit = min(vmem_limit, 96 << 20)

    kernel = functools.partial(_linear_kernel, f_total=F, tk=tk)

    return pl.pallas_call(
        kernel,
        out_shape=jax.ShapeDtypeStruct((N, 1), x.dtype),
        grid_spec=pltpu.PrefetchScalarGridSpec(
            num_scalar_prefetch=0,
            grid=(n_tiles, k_tiles),
            in_specs=[
                pl.BlockSpec((tm, tk), lambda i, k: (i, k)),            # x tile
                pl.BlockSpec((tk, 1), lambda i, k: (k, 0)),             # weight col
                pl.BlockSpec(memory_space=pltpu.MemorySpace.SMEM),      # scalar bias
            ],
            out_specs=pl.BlockSpec((tm, 1), lambda i, k: (i, 0)),
            scratch_shapes=[pltpu.VMEM((tm, 1), jnp.float32)],
        ),
        compiler_params=pltpu.CompilerParams(
            # Batch axis is independent -> "parallel" (on v7x, confirm it shards
            # across both TensorCores; pltpu.CORE_PARALLEL is the fallback).
            dimension_semantics=("parallel", "arbitrary"),
            vmem_limit_bytes=vmem_limit,
        ),
    )(x, w_col, b)


if __name__ == "__main__":
    # in_features = all_features.shape[1] after pd.get_dummies (~331 for the
    # Kaggle house-price features); small batch sizes for the test.
    N, F = 600, 331

    key = jax.random.PRNGKey(0)
    kx, kw, kb = jax.random.split(key, 3)

    # nn.Linear default init: uniform in [-1/sqrt(F), 1/sqrt(F)]; weight kept
    # in the PyTorch (out_features=1, in_features=F) layout.
    bound = 1.0 / jnp.sqrt(jnp.float32(F))
    w = jax.random.uniform(kw, (1, F), jnp.float32, -bound, bound)
    b = jax.random.uniform(kb, (1,), jnp.float32, -bound, bound)
    x = jax.random.normal(kx, (N, F), jnp.float32)

    ref = x @ w.T + b[None, :]

    # 1) Streaming kernel path: full feature dim in one block, single batch tile.
    out1 = jax.block_until_ready(predict_forward(x, w, b, force_pallas=True))
    assert out1.shape == (N, 1)
    assert jnp.allclose(out1, ref, atol=1e-4, rtol=1e-5)

    # 2) Forced small tiles: ragged batch tail (600 = 2*256 + 88) and ragged
    #    reduction tail (331 = 2*128 + 75) exercise the no-pad grid, the
    #    accumulator init/finalize, and the feature-tail mask.
    out2 = jax.block_until_ready(predict_forward(
        x, w, b, force_pallas=True, max_rows_per_tile=256, max_feat_per_tile=128))
    assert out2.shape == (N, 1)
    assert jnp.allclose(out2, ref, atol=1e-4, rtol=1e-5)

    # 3) Tiny batch (the module's realistic inference shape) dispatches to the
    #    plain-XLA fast path.
    out3 = jax.block_until_ready(predict_forward(x[:10], w, b))
    assert out3.shape == (10, 1)
    assert jnp.allclose(out3, ref[:10], atol=1e-4, rtol=1e-5)

    print("KERNEL_OK")
</pallas_src>

<mosaic_0001>
module attributes {stable_mosaic.version = 11 : i64} {
  func.func @_linear_kernel(%arg0: i32, %arg1: i32, %arg2: memref<600x331xf32, #tpu.memory_space<vmem>>, %arg3: memref<331x1xf32, #tpu.memory_space<vmem>>, %arg4: memref<1xf32, #tpu.memory_space<smem>>, %arg5: memref<600x1xf32, #tpu.memory_space<vmem>>, %arg6: memref<600x1xf32, #tpu.memory_space<vmem>>) attributes {dimension_semantics = [#tpu.dimension_semantics<parallel>, #tpu.dimension_semantics<arbitrary>], iteration_bounds = array<i64: 1, 1>, scalar_prefetch = 0 : i64, scratch_operands = 1 : i64, tpu.core_type = #tpu.core_type<tc>, window_params = [{transform_indices = @transform_0, window_bounds = array<i64: 600, 331>}, {transform_indices = @transform_1, window_bounds = array<i64: 331, 1>}, {transform_indices = @transform_2, window_bounds = array<i64: 1>}, {transform_indices = @transform_3, window_bounds = array<i64: 600, 1>}]} {
    %c0_i32 = arith.constant 0 : i32
    %0 = arith.cmpi eq, %arg1, %c0_i32 : i32
    %1 = arith.extui %0 : i1 to i32
    %c0_i32_0 = arith.constant 0 : i32
    %2 = arith.cmpi ne, %1, %c0_i32_0 : i32
    scf.if %2 {
      %cst_10 = arith.constant 0.000000e+00 : f32
      %12 = vector.broadcast %cst_10 : f32 to vector<600x1xf32>
      %c0_11 = arith.constant 0 : index
      %c0_12 = arith.constant 0 : index
      %13 = vector.load %arg6[%c0_11, %c0_12] : memref<600x1xf32, #tpu.memory_space<vmem>>, vector<600x1xf32>
      tpu.vector_store %arg6[%c0_11, %c0_12], %12 {strides = array<i32>} : memref<600x1xf32, #tpu.memory_space<vmem>>, vector<600x1xf32>,
    } else {
    }
    %c0 = arith.constant 0 : index
    %c0_1 = arith.constant 0 : index
    %3 = vector.load %arg2[%c0, %c0_1] : memref<600x331xf32, #tpu.memory_space<vmem>>, vector<600x331xf32>
    %c0_2 = arith.constant 0 : index
    %c0_3 = arith.constant 0 : index
    %4 = vector.load %arg3[%c0_2, %c0_3] : memref<331x1xf32, #tpu.memory_space<vmem>>, vector<331x1xf32>
    %c0_4 = arith.constant 0 : index
    %c0_5 = arith.constant 0 : index
    %5 = vector.load %arg6[%c0_4, %c0_5] : memref<600x1xf32, #tpu.memory_space<vmem>>, vector<600x1xf32>
    %cst = arith.constant dense<0.000000e+00> : vector<600x1xf32>
    %6 = tpu.matmul %3, %4, %cst {dimension_numbers = #tpu.dot_dimension_numbers<[1], [0], [0], [1], [0, 0, 1, 1], [], []>} : vector<600x331xf32>, vector<331x1xf32>, vector<600x1xf32> -> vector<600x1xf32>
    %7 = arith.addf %5, %6 : vector<600x1xf32>
    %c0_6 = arith.constant 0 : index
    %c0_7 = arith.constant 0 : index
    %8 = vector.load %arg6[%c0_6, %c0_7] : memref<600x1xf32, #tpu.memory_space<vmem>>, vector<600x1xf32>
    tpu.vector_store %arg6[%c0_6, %c0_7], %7 {strides = array<i32>} : memref<600x1xf32, #tpu.memory_space<vmem>>, vector<600x1xf32>,
    %c0_i32_8 = arith.constant 0 : i32
    %9 = arith.cmpi eq, %arg1, %c0_i32_8 : i32
    %10 = arith.extui %9 : i1 to i32
    %c0_i32_9 = arith.constant 0 : i32
    %11 = arith.cmpi ne, %10, %c0_i32_9 : i32
    scf.if %11 {
      %c0_10 = arith.constant 0 : index
      %c0_11 = arith.constant 0 : index
      %12 = vector.load %arg6[%c0_10, %c0_11] : memref<600x1xf32, #tpu.memory_space<vmem>>, vector<600x1xf32>
      %c0_12 = arith.constant 0 : index
      %13 = memref.load %arg4[%c0_12] : memref<1xf32, #tpu.memory_space<smem>>
      %14 = vector.broadcast %13 : f32 to vector<600x1xf32>
      %15 = arith.addf %12, %14 : vector<600x1xf32>
      %c0_13 = arith.constant 0 : index
      %c0_14 = arith.constant 0 : index
      %16 = vector.load %arg5[%c0_13, %c0_14] : memref<600x1xf32, #tpu.memory_space<vmem>>, vector<600x1xf32>
      tpu.vector_store %arg5[%c0_13, %c0_14], %15 {strides = array<i32>} : memref<600x1xf32, #tpu.memory_space<vmem>>, vector<600x1xf32>,
    } else {
    }
    return
  }
  func.func @transform_0(%arg0: i32, %arg1: i32) -> (i32, i32) {
    %c0_i32 = arith.constant 0 : i32
    return %arg0, %arg1 : i32, i32
  }
  func.func @transform_1(%arg0: i32, %arg1: i32) -> (i32, i32) {
    %c0_i32 = arith.constant 0 : i32
    %c0_i32_0 = arith.constant 0 : i32
    return %arg1, %c0_i32 : i32, i32
  }
  func.func @transform_2(%arg0: i32, %arg1: i32) -> i32 {
    %c0_i32 = arith.constant 0 : i32
    %c0_i32_0 = arith.constant 0 : i32
    return %c0_i32 : i32
  }
  func.func @transform_3(%arg0: i32, %arg1: i32) -> (i32, i32) {
    %c0_i32 = arith.constant 0 : i32
    %c0_i32_0 = arith.constant 0 : i32
    return %arg0, %c0_i32 : i32, i32
  }
}

</mosaic_0001>

<llo_original>
// kernel: tpu_custom_call.1
$region0: #{tpu_custom_call.1}
  #allocation0 [shape = 'u32[]', space=smem, size = 0x4, offset = 0x4, fixed_abs, tag = 'smem constant byte address 0x4 - core index']
  #allocation1 [shape = 'u32[144,128]{1,0:T(1,128)}', space=vmem, size = 0x12000, scoped, tag = 'internal scratch']
  #allocation2 [shape = 'f32[600,1]{1,0:T(8,128)}', space=vmem, size = 0x4b000, scoped, tag = 'scratch operand']
  #allocation3 [shape = 'f32[1]{0:T(128)S(6)}', space=smem, size = 0x200, scoped, tag = 'scoped memory for tpu_custom_call.1']
  %s0 = inlined_call_operand.vmem [shape: f32[600,331], index: 0, kind: input, shape index: {}]
  %s1 = inlined_call_operand.vmem [shape: f32[331,1], index: 1, kind: input, shape index: {}]
  %s2 = inlined_call_operand.<no memory space> [shape: f32[1], index: 2, kind: input, shape index: {}]
  %s3 = inlined_call_operand.vmem [shape: f32[600,1], index: 3, kind: output, shape index: {}]
  %s4 = sld [smem:[#allocation0]]
  $region30: #{tpu_custom_call.1} parent=0
    _
  %s6 = ssub.s32 1, %s4
  %s7 = scalar_select 0, %s6, %s4
  %8 = sst [smem:[#allocation3]] %s2
  // Predicated region
  $region2: #{tpu_custom_call.1} parent=0 // pred_check
    _
  $region3: #{tpu_custom_call.1} parent=0 // pred_check_branch
    %10 = sbr.rel (0) target = $region5
  $region4: #{tpu_custom_call.1} parent=0 // pred_region
    _
  $region5: #{tpu_custom_call.1} parent=0 // pred_fallthru
    _
  // Predicated region
  $region6: #{tpu_custom_call.1} parent=0 // pred_check
    _
  $region7: #{tpu_custom_call.1} parent=0 // pred_check_branch
    %12 = sbr.rel (0) target = $region9
  $region8: #{tpu_custom_call.1} parent=0 // pred_region
    _
  $region9: #{tpu_custom_call.1} parent=0 // pred_fallthru
    _
  // Predicated region
  $region10: #{tpu_custom_call.1} parent=0 // pred_check
    _
  $region11: #{tpu_custom_call.1} parent=0 // pred_check_branch
    %14 = sbr.rel (0) target = $region13
  $region12: #{tpu_custom_call.1} parent=0 // pred_region
    _
  $region13: #{tpu_custom_call.1} parent=0 // pred_fallthru
    _
  %p15 = scmp.eq.s32.totalorder 0, 0
  // Predicated region
  $region14: #{tpu_custom_call.1} parent=0 // pred_check
    %p16 = pneg %p15
  $region15: #{tpu_custom_call.1} parent=0 // pred_check_branch
    %18 = sbr.rel (%p16) target = $region17
  $region16: #{tpu_custom_call.1} parent=0 // pred_region
    %vm19 = vcmask 7168
    %20 = vst.msk [vmem:[#allocation2] sm:$0xff] %vm19, 0.0
    %21 = vst.msk [vmem:[#allocation2 + $0x8] sm:$0xff] %vm19, 0.0
    %22 = vst.msk [vmem:[#allocation2 + $0x10] sm:$0xff] %vm19, 0.0
    %23 = vst.msk [vmem:[#allocation2 + $0x18] sm:$0xff] %vm19, 0.0
    %24 = vst.msk [vmem:[#allocation2 + $0x20] sm:$0xff] %vm19, 0.0
    %25 = vst.msk [vmem:[#allocation2 + $0x28] sm:$0xff] %vm19, 0.0
    %26 = vst.msk [vmem:[#allocation2 + $0x30] sm:$0xff] %vm19, 0.0
    %27 = vst.msk [vmem:[#allocation2 + $0x38] sm:$0xff] %vm19, 0.0
    %28 = vst.msk [vmem:[#allocation2 + $0x40] sm:$0xff] %vm19, 0.0
    %29 = vst.msk [vmem:[#allocation2 + $0x48] sm:$0xff] %vm19, 0.0
    %30 = vst.msk [vmem:[#allocation2 + $0x50] sm:$0xff] %vm19, 0.0
    %31 = vst.msk [vmem:[#allocation2 + $0x58] sm:$0xff] %vm19, 0.0
    %32 = vst.msk [vmem:[#allocation2 + $0x60] sm:$0xff] %vm19, 0.0
    %33 = vst.msk [vmem:[#allocation2 + $0x68] sm:$0xff] %vm19, 0.0
    %34 = vst.msk [vmem:[#allocation2 + $0x70] sm:$0xff] %vm19, 0.0
    %35 = vst.msk [vmem:[#allocation2 + $0x78] sm:$0xff] %vm19, 0.0
    %36 = vst.msk [vmem:[#allocation2 + $0x80] sm:$0xff] %vm19, 0.0
    %37 = vst.msk [vmem:[#allocation2 + $0x88] sm:$0xff] %vm19, 0.0
    %38 = vst.msk [vmem:[#allocation2 + $0x90] sm:$0xff] %vm19, 0.0
    %39 = vst.msk [vmem:[#allocation2 + $0x98] sm:$0xff] %vm19, 0.0
    %40 = vst.msk [vmem:[#allocation2 + $0xa0] sm:$0xff] %vm19, 0.0
    %41 = vst.msk [vmem:[#allocation2 + $0xa8] sm:$0xff] %vm19, 0.0
    %42 = vst.msk [vmem:[#allocation2 + $0xb0] sm:$0xff] %vm19, 0.0
    %43 = vst.msk [vmem:[#allocation2 + $0xb8] sm:$0xff] %vm19, 0.0
    %44 = vst.msk [vmem:[#allocation2 + $0xc0] sm:$0xff] %vm19, 0.0
    %45 = vst.msk [vmem:[#allocation2 + $0xc8] sm:$0xff] %vm19, 0.0
    %46 = vst.msk [vmem:[#allocation2 + $0xd0] sm:$0xff] %vm19, 0.0
    %47 = vst.msk [vmem:[#allocation2 + $0xd8] sm:$0xff] %vm19, 0.0
    %48 = vst.msk [vmem:[#allocation2 + $0xe0] sm:$0xff] %vm19, 0.0
    %49 = vst.msk [vmem:[#allocation2 + $0xe8] sm:$0xff] %vm19, 0.0
    %50 = vst.msk [vmem:[#allocation2 + $0xf0] sm:$0xff] %vm19, 0.0
    %51 = vst.msk [vmem:[#allocation2 + $0xf8] sm:$0xff] %vm19, 0.0
    %52 = vst.msk [vmem:[#allocation2 + $0x100] sm:$0xff] %vm19, 0.0
    %53 = vst.msk [vmem:[#allocation2 + $0x108] sm:$0xff] %vm19, 0.0
    %54 = vst.msk [vmem:[#allocation2 + $0x110] sm:$0xff] %vm19, 0.0
    %55 = vst.msk [vmem:[#allocation2 + $0x118] sm:$0xff] %vm19, 0.0
    %56 = vst.msk [vmem:[#allocation2 + $0x120] sm:$0xff] %vm19, 0.0
    %57 = vst.msk [vmem:[#allocation2 + $0x128] sm:$0xff] %vm19, 0.0
    %58 = vst.msk [vmem:[#allocation2 + $0x130] sm:$0xff] %vm19, 0.0
    %59 = vst.msk [vmem:[#allocation2 + $0x138] sm:$0xff] %vm19, 0.0
    %60 = vst.msk [vmem:[#allocation2 + $0x140] sm:$0xff] %vm19, 0.0
    %61 = vst.msk [vmem:[#allocation2 + $0x148] sm:$0xff] %vm19, 0.0
    %62 = vst.msk [vmem:[#allocation2 + $0x150] sm:$0xff] %vm19, 0.0
    %63 = vst.msk [vmem:[#allocation2 + $0x158] sm:$0xff] %vm19, 0.0
    %64 = vst.msk [vmem:[#allocation2 + $0x160] sm:$0xff] %vm19, 0.0
    %65 = vst.msk [vmem:[#allocation2 + $0x168] sm:$0xff] %vm19, 0.0
    %66 = vst.msk [vmem:[#allocation2 + $0x170] sm:$0xff] %vm19, 0.0
    %67 = vst.msk [vmem:[#allocation2 + $0x178] sm:$0xff] %vm19, 0.0
    %68 = vst.msk [vmem:[#allocation2 + $0x180] sm:$0xff] %vm19, 0.0
    %69 = vst.msk [vmem:[#allocation2 + $0x188] sm:$0xff] %vm19, 0.0
    %70 = vst.msk [vmem:[#allocation2 + $0x190] sm:$0xff] %vm19, 0.0
    %71 = vst.msk [vmem:[#allocation2 + $0x198] sm:$0xff] %vm19, 0.0
    %72 = vst.msk [vmem:[#allocation2 + $0x1a0] sm:$0xff] %vm19, 0.0
    %73 = vst.msk [vmem:[#allocation2 + $0x1a8] sm:$0xff] %vm19, 0.0
    %74 = vst.msk [vmem:[#allocation2 + $0x1b0] sm:$0xff] %vm19, 0.0
    %75 = vst.msk [vmem:[#allocation2 + $0x1b8] sm:$0xff] %vm19, 0.0
    %76 = vst.msk [vmem:[#allocation2 + $0x1c0] sm:$0xff] %vm19, 0.0
    %77 = vst.msk [vmem:[#allocation2 + $0x1c8] sm:$0xff] %vm19, 0.0
    %78 = vst.msk [vmem:[#allocation2 + $0x1d0] sm:$0xff] %vm19, 0.0
    %79 = vst.msk [vmem:[#allocation2 + $0x1d8] sm:$0xff] %vm19, 0.0
    %80 = vst.msk [vmem:[#allocation2 + $0x1e0] sm:$0xff] %vm19, 0.0
    %81 = vst.msk [vmem:[#allocation2 + $0x1e8] sm:$0xff] %vm19, 0.0
    %82 = vst.msk [vmem:[#allocation2 + $0x1f0] sm:$0xff] %vm19, 0.0
    %83 = vst.msk [vmem:[#allocation2 + $0x1f8] sm:$0xff] %vm19, 0.0
    %84 = vst.msk [vmem:[#allocation2 + $0x200] sm:$0xff] %vm19, 0.0
    %85 = vst.msk [vmem:[#allocation2 + $0x208] sm:$0xff] %vm19, 0.0
    %86 = vst.msk [vmem:[#allocation2 + $0x210] sm:$0xff] %vm19, 0.0
    %87 = vst.msk [vmem:[#allocation2 + $0x218] sm:$0xff] %vm19, 0.0
    %88 = vst.msk [vmem:[#allocation2 + $0x220] sm:$0xff] %vm19, 0.0
    %89 = vst.msk [vmem:[#allocation2 + $0x228] sm:$0xff] %vm19, 0.0
    %90 = vst.msk [vmem:[#allocation2 + $0x230] sm:$0xff] %vm19, 0.0
    %91 = vst.msk [vmem:[#allocation2 + $0x238] sm:$0xff] %vm19, 0.0
    %92 = vst.msk [vmem:[#allocation2 + $0x240] sm:$0xff] %vm19, 0.0
    %93 = vst.msk [vmem:[#allocation2 + $0x248] sm:$0xff] %vm19, 0.0
    %94 = vst.msk [vmem:[#allocation2 + $0x250] sm:$0xff] %vm19, 0.0
  $region17: #{tpu_custom_call.1} parent=0 // pred_fallthru
    _
  %v95 = vld [vmem:[%s0] sm:$0xff]
  %v96 = vld [vmem:[%s0 + $0x8] sm:$0xff]
  %v97 = vld [vmem:[%s0 + $0x10] sm:$0xff]
  %v98 = vld [vmem:[%s0 + $0x18] sm:$0xff]
  %v99 = vld [vmem:[%s0 + $0x20] sm:$0xff]
  %v100 = vld [vmem:[%s0 + $0x28] sm:$0xff]
  %v101 = vld [vmem:[%s0 + $0x30] sm:$0xff]
  %v102 = vld [vmem:[%s0 + $0x38] sm:$0xff]
  %v103 = vld [vmem:[%s0 + $0x40] sm:$0xff]
  %v104 = vld [vmem:[%s0 + $0x48] sm:$0xff]
  %v105 = vld [vmem:[%s0 + $0x50] sm:$0xff]
  %v106 = vld [vmem:[%s0 + $0x58] sm:$0xff]
  %v107 = vld [vmem:[%s0 + $0x60] sm:$0xff]
  %v108 = vld [vmem:[%s0 + $0x68] sm:$0xff]
  %v109 = vld [vmem:[%s0 + $0x70] sm:$0xff]
  %v110 = vld [vmem:[%s0 + $0x78] sm:$0xff]
  %v111 = vld [vmem:[%s0 + $0x80] sm:$0xff]
  %v112 = vld [vmem:[%s0 + $0x88] sm:$0xff]
  %v113 = vld [vmem:[%s0 + $0x90] sm:$0xff]
  %v114 = vld [vmem:[%s0 + $0x98] sm:$0xff]
  %v115 = vld [vmem:[%s0 + $0xa0] sm:$0xff]
  %v116 = vld [vmem:[%s0 + $0xa8] sm:$0xff]
  %v117 = vld [vmem:[%s0 + $0xb0] sm:$0xff]
  %v118 = vld [vmem:[%s0 + $0xb8] sm:$0xff]
  %v119 = vld [vmem:[%s0 + $0xc0] sm:$0xff]
  %v120 = vld [vmem:[%s0 + $0xc8] sm:$0xff]
  %v121 = vld [vmem:[%s0 + $0xd0] sm:$0xff]
  %v122 = vld [vmem:[%s0 + $0xd8] sm:$0xff]
  %v123 = vld [vmem:[%s0 + $0xe0] sm:$0xff]
  %v124 = vld [vmem:[%s0 + $0xe8] sm:$0xff]
  %v125 = vld [vmem:[%s0 + $0xf0] sm:$0xff]
  %v126 = vld [vmem:[%s0 + $0xf8] sm:$0xff]
  %v127 = vld [vmem:[%s0 + $0x100] sm:$0xff]
  %v128 = vld [vmem:[%s0 + $0x108] sm:$0xff]
  %v129 = vld [vmem:[%s0 + $0x110] sm:$0xff]
  %v130 = vld [vmem:[%s0 + $0x118] sm:$0xff]
  %v131 = vld [vmem:[%s0 + $0x120] sm:$0xff]
  %v132 = vld [vmem:[%s0 + $0x128] sm:$0xff]
  %v133 = vld [vmem:[%s0 + $0x130] sm:$0xff]
  %v134 = vld [vmem:[%s0 + $0x138] sm:$0xff]
  %v135 = vld [vmem:[%s0 + $0x140] sm:$0xff]
  %v136 = vld [vmem:[%s0 + $0x148] sm:$0xff]
  %v137 = vld [vmem:[%s0 + $0x150] sm:$0xff]
  %v138 = vld [vmem:[%s0 + $0x158] sm:$0xff]
  %v139 = vld [vmem:[%s0 + $0x160] sm:$0xff]
  %v140 = vld [vmem:[%s0 + $0x168] sm:$0xff]
  %v141 = vld [vmem:[%s0 + $0x170] sm:$0xff]
  %v142 = vld [vmem:[%s0 + $0x178] sm:$0xff]
  %v143 = vld [vmem:[%s0 + $0x180] sm:$0xff]
  %v144 = vld [vmem:[%s0 + $0x188] sm:$0xff]
  %v145 = vld [vmem:[%s0 + $0x190] sm:$0xff]
  %v146 = vld [vmem:[%s0 + $0x198] sm:$0xff]
  %v147 = vld [vmem:[%s0 + $0x1a0] sm:$0xff]
  %v148 = vld [vmem:[%s0 + $0x1a8] sm:$0xff]
  %v149 = vld [vmem:[%s0 + $0x1b0] sm:$0xff]
  %v150 = vld [vmem:[%s0 + $0x1b8] sm:$0xff]
  %v151 = vld [vmem:[%s0 + $0x1c0] sm:$0xff]
  %v152 = vld [vmem:[%s0 + $0x1c8] sm:$0xff]
  %v153 = vld [vmem:[%s0 + $0x1d0] sm:$0xff]
  %v154 = vld [vmem:[%s0 + $0x1d8] sm:$0xff]
  %v155 = vld [vmem:[%s0 + $0x1e0] sm:$0xff]
  %v156 = vld [vmem:[%s0 + $0x1e8] sm:$0xff]
  %v157 = vld [vmem:[%s0 + $0x1f0] sm:$0xff]
  %v158 = vld [vmem:[%s0 + $0x1f8] sm:$0xff]
  %v159 = vld [vmem:[%s0 + $0x200] sm:$0xff]
  %v160 = vld [vmem:[%s0 + $0x208] sm:$0xff]
  %v161 = vld [vmem:[%s0 + $0x210] sm:$0xff]
  %v162 = vld [vmem:[%s0 + $0x218] sm:$0xff]
  %v163 = vld [vmem:[%s0 + $0x220] sm:$0xff]
  %v164 = vld [vmem:[%s0 + $0x228] sm:$0xff]
  %v165 = vld [vmem:[%s0 + $0x230] sm:$0xff]
  %v166 = vld [vmem:[%s0 + $0x238] sm:$0xff]
  %v167 = vld [vmem:[%s0 + $0x240] sm:$0xff]
  %v168 = vld [vmem:[%s0 + $0x248] sm:$0xff]
  %v169 = vld [vmem:[%s0 + $0x250] sm:$0xff]
  %v170 = vld [vmem:[%s0 + $0x258] sm:$0xff]
  %v171 = vld [vmem:[%s0 + $0x260] sm:$0xff]
  %v172 = vld [vmem:[%s0 + $0x268] sm:$0xff]
  %v173 = vld [vmem:[%s0 + $0x270] sm:$0xff]
  %v174 = vld [vmem:[%s0 + $0x278] sm:$0xff]
  %v175 = vld [vmem:[%s0 + $0x280] sm:$0xff]
  %v176 = vld [vmem:[%s0 + $0x288] sm:$0xff]
  %v177 = vld [vmem:[%s0 + $0x290] sm:$0xff]
  %v178 = vld [vmem:[%s0 + $0x298] sm:$0xff]
  %v179 = vld [vmem:[%s0 + $0x2a0] sm:$0xff]
  %v180 = vld [vmem:[%s0 + $0x2a8] sm:$0xff]
  %v181 = vld [vmem:[%s0 + $0x2b0] sm:$0xff]
  %v182 = vld [vmem:[%s0 + $0x2b8] sm:$0xff]
  %v183 = vld [vmem:[%s0 + $0x2c0] sm:$0xff]
  %v184 = vld [vmem:[%s0 + $0x2c8] sm:$0xff]
  %v185 = vld [vmem:[%s0 + $0x2d0] sm:$0xff]
  %v186 = vld [vmem:[%s0 + $0x2d8] sm:$0xff]
  %v187 = vld [vmem:[%s0 + $0x2e0] sm:$0xff]
  %v188 = vld [vmem:[%s0 + $0x2e8] sm:$0xff]
  %v189 = vld [vmem:[%s0 + $0x2f0] sm:$0xff]
  %v190 = vld [vmem:[%s0 + $0x2f8] sm:$0xff]
  %v191 = vld [vmem:[%s0 + $0x300] sm:$0xff]
  %v192 = vld [vmem:[%s0 + $0x308] sm:$0xff]
  %v193 = vld [vmem:[%s0 + $0x310] sm:$0xff]
  %v194 = vld [vmem:[%s0 + $0x318] sm:$0xff]
  %v195 = vld [vmem:[%s0 + $0x320] sm:$0xff]
  %v196 = vld [vmem:[%s0 + $0x328] sm:$0xff]
  %v197 = vld [vmem:[%s0 + $0x330] sm:$0xff]
  %v198 = vld [vmem:[%s0 + $0x338] sm:$0xff]
  %v199 = vld [vmem:[%s0 + $0x340] sm:$0xff]
  %v200 = vld [vmem:[%s0 + $0x348] sm:$0xff]
  %v201 = vld [vmem:[%s0 + $0x350] sm:$0xff]
  %v202 = vld [vmem:[%s0 + $0x358] sm:$0xff]
  %v203 = vld [vmem:[%s0 + $0x360] sm:$0xff]
  %v204 = vld [vmem:[%s0 + $0x368] sm:$0xff]
  %v205 = vld [vmem:[%s0 + $0x370] sm:$0xff]
  %v206 = vld [vmem:[%s0 + $0x378] sm:$0xff]
  %v207 = vld [vmem:[%s0 + $0x380] sm:$0xff]
  %v208 = vld [vmem:[%s0 + $0x388] sm:$0xff]
  %v209 = vld [vmem:[%s0 + $0x390] sm:$0xff]
  %v210 = vld [vmem:[%s0 + $0x398] sm:$0xff]
  %v211 = vld [vmem:[%s0 + $0x3a0] sm:$0xff]
  %v212 = vld [vmem:[%s0 + $0x3a8] sm:$0xff]
  %v213 = vld [vmem:[%s0 + $0x3b0] sm:$0xff]
  %v214 = vld [vmem:[%s0 + $0x3b8] sm:$0xff]
  %v215 = vld [vmem:[%s0 + $0x3c0] sm:$0xff]
  %v216 = vld [vmem:[%s0 + $0x3c8] sm:$0xff]
  %v217 = vld [vmem:[%s0 + $0x3d0] sm:$0xff]
  %v218 = vld [vmem:[%s0 + $0x3d8] sm:$0xff]
  %v219 = vld [vmem:[%s0 + $0x3e0] sm:$0xff]
  %v220 = vld [vmem:[%s0 + $0x3e8] sm:$0xff]
  %v221 = vld [vmem:[%s0 + $0x3f0] sm:$0xff]
  %v222 = vld [vmem:[%s0 + $0x3f8] sm:$0xff]
  %v223 = vld [vmem:[%s0 + $0x400] sm:$0xff]
  %v224 = vld [vmem:[%s0 + $0x408] sm:$0xff]
  %v225 = vld [vmem:[%s0 + $0x410] sm:$0xff]
  %v226 = vld [vmem:[%s0 + $0x418] sm:$0xff]
  %v227 = vld [vmem:[%s0 + $0x420] sm:$0xff]
  %v228 = vld [vmem:[%s0 + $0x428] sm:$0xff]
  %v229 = vld [vmem:[%s0 + $0x430] sm:$0xff]
  %v230 = vld [vmem:[%s0 + $0x438] sm:$0xff]
  %v231 = vld [vmem:[%s0 + $0x440] sm:$0xff]
  %v232 = vld [vmem:[%s0 + $0x448] sm:$0xff]
  %v233 = vld [vmem:[%s0 + $0x450] sm:$0xff]
  %v234 = vld [vmem:[%s0 + $0x458] sm:$0xff]
  %v235 = vld [vmem:[%s0 + $0x460] sm:$0xff]
  %v236 = vld [vmem:[%s0 + $0x468] sm:$0xff]
  %v237 = vld [vmem:[%s0 + $0x470] sm:$0xff]
  %v238 = vld [vmem:[%s0 + $0x478] sm:$0xff]
  %v239 = vld [vmem:[%s0 + $0x480] sm:$0xff]
  %v240 = vld [vmem:[%s0 + $0x488] sm:$0xff]
  %v241 = vld [vmem:[%s0 + $0x490] sm:$0xff]
  %v242 = vld [vmem:[%s0 + $0x498] sm:$0xff]
  %v243 = vld [vmem:[%s0 + $0x4a0] sm:$0xff]
  %v244 = vld [vmem:[%s0 + $0x4a8] sm:$0xff]
  %v245 = vld [vmem:[%s0 + $0x4b0] sm:$0xff]
  %v246 = vld [vmem:[%s0 + $0x4b8] sm:$0xff]
  %v247 = vld [vmem:[%s0 + $0x4c0] sm:$0xff]
  %v248 = vld [vmem:[%s0 + $0x4c8] sm:$0xff]
  %v249 = vld [vmem:[%s0 + $0x4d0] sm:$0xff]
  %v250 = vld [vmem:[%s0 + $0x4d8] sm:$0xff]
  %v251 = vld [vmem:[%s0 + $0x4e0] sm:$0xff]
  %v252 = vld [vmem:[%s0 + $0x4e8] sm:$0xff]
  %v253 = vld [vmem:[%s0 + $0x4f0] sm:$0xff]
  %v254 = vld [vmem:[%s0 + $0x4f8] sm:$0xff]
  %v255 = vld [vmem:[%s0 + $0x500] sm:$0xff]
  %v256 = vld [vmem:[%s0 + $0x508] sm:$0xff]
  %v257 = vld [vmem:[%s0 + $0x510] sm:$0xff]
  %v258 = vld [vmem:[%s0 + $0x518] sm:$0xff]
  %v259 = vld [vmem:[%s0 + $0x520] sm:$0xff]
  %v260 = vld [vmem:[%s0 + $0x528] sm:$0xff]
  %v261 = vld [vmem:[%s0 + $0x530] sm:$0xff]
  %v262 = vld [vmem:[%s0 + $0x538] sm:$0xff]
  %v263 = vld [vmem:[%s0 + $0x540] sm:$0xff]
  %v264 = vld [vmem:[%s0 + $0x548] sm:$0xff]
  %v265 = vld [vmem:[%s0 + $0x550] sm:$0xff]
  %v266 = vld [vmem:[%s0 + $0x558] sm:$0xff]
  %v267 = vld [vmem:[%s0 + $0x560] sm:$0xff]
  %v268 = vld [vmem:[%s0 + $0x568] sm:$0xff]
  %v269 = vld [vmem:[%s0 + $0x570] sm:$0xff]
  %v270 = vld [vmem:[%s0 + $0x578] sm:$0xff]
  %v271 = vld [vmem:[%s0 + $0x580] sm:$0xff]
  %v272 = vld [vmem:[%s0 + $0x588] sm:$0xff]
  %v273 = vld [vmem:[%s0 + $0x590] sm:$0xff]
  %v274 = vld [vmem:[%s0 + $0x598] sm:$0xff]
  %v275 = vld [vmem:[%s0 + $0x5a0] sm:$0xff]
  %v276 = vld [vmem:[%s0 + $0x5a8] sm:$0xff]
  %v277 = vld [vmem:[%s0 + $0x5b0] sm:$0xff]
  %v278 = vld [vmem:[%s0 + $0x5b8] sm:$0xff]
  %v279 = vld [vmem:[%s0 + $0x5c0] sm:$0xff]
  %v280 = vld [vmem:[%s0 + $0x5c8] sm:$0xff]
  %v281 = vld [vmem:[%s0 + $0x5d0] sm:$0xff]
  %v282 = vld [vmem:[%s0 + $0x5d8] sm:$0xff]
  %v283 = vld [vmem:[%s0 + $0x5e0] sm:$0xff]
  %v284 = vld [vmem:[%s0 + $0x5e8] sm:$0xff]
  %v285 = vld [vmem:[%s0 + $0x5f0] sm:$0xff]
  %v286 = vld [vmem:[%s0 + $0x5f8] sm:$0xff]
  %v287 = vld [vmem:[%s0 + $0x600] sm:$0xff]
  %v288 = vld [vmem:[%s0 + $0x608] sm:$0xff]
  %v289 = vld [vmem:[%s0 + $0x610] sm:$0xff]
  %v290 = vld [vmem:[%s0 + $0x618] sm:$0xff]
  %v291 = vld [vmem:[%s0 + $0x620] sm:$0xff]
  %v292 = vld [vmem:[%s0 + $0x628] sm:$0xff]
  %v293 = vld [vmem:[%s0 + $0x630] sm:$0xff]
  %v294 = vld [vmem:[%s0 + $0x638] sm:$0xff]
  %v295 = vld [vmem:[%s0 + $0x640] sm:$0xff]
  %v296 = vld [vmem:[%s0 + $0x648] sm:$0xff]
  %v297 = vld [vmem:[%s0 + $0x650] sm:$0xff]
  %v298 = vld [vmem:[%s0 + $0x658] sm:$0xff]
  %v299 = vld [vmem:[%s0 + $0x660] sm:$0xff]
  %v300 = vld [vmem:[%s0 + $0x668] sm:$0xff]
  %v301 = vld [vmem:[%s0 + $0x670] sm:$0xff]
  %v302 = vld [vmem:[%s0 + $0x678] sm:$0xff]
  %v303 = vld [vmem:[%s0 + $0x680] sm:$0xff]
  %v304 = vld [vmem:[%s0 + $0x688] sm:$0xff]
  %v305 = vld [vmem:[%s0 + $0x690] sm:$0xff]
  %v306 = vld [vmem:[%s0 + $0x698] sm:$0xff]
  %v307 = vld [vmem:[%s0 + $0x6a0] sm:$0xff]
  %v308 = vld [vmem:[%s0 + $0x6a8] sm:$0xff]
  %v309 = vld [vmem:[%s0 + $0x6b0] sm:$0xff]
  %v310 = vld [vmem:[%s0 + $0x6b8] sm:$0xff]
  %v311 = vld [vmem:[%s0 + $0x6c0] sm:$0xff]
  %v312 = vld [vmem:[%s0 + $0x6c8] sm:$0xff]
  %v313 = vld [vmem:[%s0 + $0x6d0] sm:$0xff]
  %v314 = vld [vmem:[%s0 + $0x6d8] sm:$0xff]
  %v315 = vld [vmem:[%s0 + $0x6e0] sm:$0xff]
  %v316 = vld [vmem:[%s0 + $0x6e8] sm:$0xff]
  %v317 = vld [vmem:[%s0 + $0x6f0] sm:$0xff]
  %v318 = vld [vmem:[%s0 + $0x6f8] sm:$0xff]
  %v319 = vld [vmem:[%s0 + $0x700] sm:$0xff]
  %v320 = vld [vmem:[%s1] sm:$0xff]
  %v321 = vld [vmem:[%s1 + $0x8] sm:$0xff]
  %v322 = vld [vmem:[%s1 + $0x10] sm:$0xff]
  %v323 = vld [vmem:[%s1 + $0x18] sm:$0xff]
  %v324 = vld [vmem:[%s1 + $0x20] sm:$0xff]
  %v325 = vld [vmem:[%s1 + $0x28] sm:$0xff]
  %v326 = vld [vmem:[%s1 + $0x30] sm:$0xff]
  %v327 = vld [vmem:[%s1 + $0x38] sm:$0xff]
  %v328 = vld [vmem:[%s1 + $0x40] sm:$0xff]
  %v329 = vld [vmem:[%s1 + $0x48] sm:$0xff]
  %v330 = vld [vmem:[%s1 + $0x50] sm:$0xff]
  %v331 = vld [vmem:[%s1 + $0x58] sm:$0xff]
  %v332 = vld [vmem:[%s1 + $0x60] sm:$0xff]
  %v333 = vld [vmem:[%s1 + $0x68] sm:$0xff]
  %v334 = vld [vmem:[%s1 + $0x70] sm:$0xff]
  %v335 = vld [vmem:[%s1 + $0x78] sm:$0xff]
  %v336 = vld [vmem:[%s1 + $0x80] sm:$0xff]
  %v337 = vld [vmem:[%s1 + $0x88] sm:$0xff]
  %v338 = vld [vmem:[%s1 + $0x90] sm:$0xff]
  %v339 = vld [vmem:[%s1 + $0x98] sm:$0xff]
  %v340 = vld [vmem:[%s1 + $0xa0] sm:$0xff]
  %v341 = vld [vmem:[%s1 + $0xa8] sm:$0xff]
  %v342 = vld [vmem:[%s1 + $0xb0] sm:$0xff]
  %v343 = vld [vmem:[%s1 + $0xb8] sm:$0xff]
  %v344 = vld [vmem:[%s1 + $0xc0] sm:$0xff]
  %v345 = vld [vmem:[%s1 + $0xc8] sm:$0xff]
  %v346 = vld [vmem:[%s1 + $0xd0] sm:$0xff]
  %v347 = vld [vmem:[%s1 + $0xd8] sm:$0xff]
  %v348 = vld [vmem:[%s1 + $0xe0] sm:$0xff]
  %v349 = vld [vmem:[%s1 + $0xe8] sm:$0xff]
  %v350 = vld [vmem:[%s1 + $0xf0] sm:$0xff]
  %v351 = vld [vmem:[%s1 + $0xf8] sm:$0xff]
  %v352 = vld [vmem:[%s1 + $0x100] sm:$0xff]
  %v353 = vld [vmem:[%s1 + $0x108] sm:$0xff]
  %v354 = vld [vmem:[%s1 + $0x110] sm:$0xff]
  %v355 = vld [vmem:[%s1 + $0x118] sm:$0xff]
  %v356 = vld [vmem:[%s1 + $0x120] sm:$0xff]
  %v357 = vld [vmem:[%s1 + $0x128] sm:$0xff]
  %v358 = vld [vmem:[%s1 + $0x130] sm:$0xff]
  %v359 = vld [vmem:[%s1 + $0x138] sm:$0xff]
  %v360 = vld [vmem:[%s1 + $0x140] sm:$0xff]
  %v361 = vld [vmem:[%s1 + $0x148] sm:$0x7]
  %v362 = vld [vmem:[#allocation2] sm:$0xff]
  %v363 = vld [vmem:[#allocation2 + $0x8] sm:$0xff]
  %v364 = vld [vmem:[#allocation2 + $0x10] sm:$0xff]
  %v365 = vld [vmem:[#allocation2 + $0x18] sm:$0xff]
  %v366 = vld [vmem:[#allocation2 + $0x20] sm:$0xff]
  %v367 = vld [vmem:[#allocation2 + $0x28] sm:$0xff]
  %v368 = vld [vmem:[#allocation2 + $0x30] sm:$0xff]
  %v369 = vld [vmem:[#allocation2 + $0x38] sm:$0xff]
  %v370 = vld [vmem:[#allocation2 + $0x40] sm:$0xff]
  %v371 = vld [vmem:[#allocation2 + $0x48] sm:$0xff]
  %v372 = vld [vmem:[#allocation2 + $0x50] sm:$0xff]
  %v373 = vld [vmem:[#allocation2 + $0x58] sm:$0xff]
  %v374 = vld [vmem:[#allocation2 + $0x60] sm:$0xff]
  %v375 = vld [vmem:[#allocation2 + $0x68] sm:$0xff]
  %v376 = vld [vmem:[#allocation2 + $0x70] sm:$0xff]
  %v377 = vld [vmem:[#allocation2 + $0x78] sm:$0xff]
  %v378 = vld [vmem:[#allocation2 + $0x80] sm:$0xff]
  %v379 = vld [vmem:[#allocation2 + $0x88] sm:$0xff]
  %v380 = vld [vmem:[#allocation2 + $0x90] sm:$0xff]
  %v381 = vld [vmem:[#allocation2 + $0x98] sm:$0xff]
  %v382 = vld [vmem:[#allocation2 + $0xa0] sm:$0xff]
  %v383 = vld [vmem:[#allocation2 + $0xa8] sm:$0xff]
  %v384 = vld [vmem:[#allocation2 + $0xb0] sm:$0xff]
  %v385 = vld [vmem:[#allocation2 + $0xb8] sm:$0xff]
  %v386 = vld [vmem:[#allocation2 + $0xc0] sm:$0xff]
  %v387 = vld [vmem:[#allocation2 + $0xc8] sm:$0xff]
  %v388 = vld [vmem:[#allocation2 + $0xd0] sm:$0xff]
  %v389 = vld [vmem:[#allocation2 + $0xd8] sm:$0xff]
  %v390 = vld [vmem:[#allocation2 + $0xe0] sm:$0xff]
  %v391 = vld [vmem:[#allocation2 + $0xe8] sm:$0xff]
  %v392 = vld [vmem:[#allocation2 + $0xf0] sm:$0xff]
  %v393 = vld [vmem:[#allocation2 + $0xf8] sm:$0xff]
  %v394 = vld [vmem:[#allocation2 + $0x100] sm:$0xff]
  %v395 = vld [vmem:[#allocation2 + $0x108] sm:$0xff]
  %v396 = vld [vmem:[#allocation2 + $0x110] sm:$0xff]
  %v397 = vld [vmem:[#allocation2 + $0x118] sm:$0xff]
  %v398 = vld [vmem:[#allocation2 + $0x120] sm:$0xff]
  %v399 = vld [vmem:[#allocation2 + $0x128] sm:$0xff]
  %v400 = vld [vmem:[#allocation2 + $0x130] sm:$0xff]
  %v401 = vld [vmem:[#allocation2 + $0x138] sm:$0xff]
  %v402 = vld [vmem:[#allocation2 + $0x140] sm:$0xff]
  %v403 = vld [vmem:[#allocation2 + $0x148] sm:$0xff]
  %v404 = vld [vmem:[#allocation2 + $0x150] sm:$0xff]
  %v405 = vld [vmem:[#allocation2 + $0x158] sm:$0xff]
  %v406 = vld [vmem:[#allocation2 + $0x160] sm:$0xff]
  %v407 = vld [vmem:[#allocation2 + $0x168] sm:$0xff]
  %v408 = vld [vmem:[#allocation2 + $0x170] sm:$0xff]
  %v409 = vld [vmem:[#allocation2 + $0x178] sm:$0xff]
  %v410 = vld [vmem:[#allocation2 + $0x180] sm:$0xff]
  %v411 = vld [vmem:[#allocation2 + $0x188] sm:$0xff]
  %v412 = vld [vmem:[#allocation2 + $0x190] sm:$0xff]
  %v413 = vld [vmem:[#allocation2 + $0x198] sm:$0xff]
  %v414 = vld [vmem:[#allocation2 + $0x1a0] sm:$0xff]
  %v415 = vld [vmem:[#allocation2 + $0x1a8] sm:$0xff]
  %v416 = vld [vmem:[#allocation2 + $0x1b0] sm:$0xff]
  %v417 = vld [vmem:[#allocation2 + $0x1b8] sm:$0xff]
  %v418 = vld [vmem:[#allocation2 + $0x1c0] sm:$0xff]
  %v419 = vld [vmem:[#allocation2 + $0x1c8] sm:$0xff]
  %v420 = vld [vmem:[#allocation2 + $0x1d0] sm:$0xff]
  %v421 = vld [vmem:[#allocation2 + $0x1d8] sm:$0xff]
  %v422 = vld [vmem:[#allocation2 + $0x1e0] sm:$0xff]
  %v423 = vld [vmem:[#allocation2 + $0x1e8] sm:$0xff]
  %v424 = vld [vmem:[#allocation2 + $0x1f0] sm:$0xff]
  %v425 = vld [vmem:[#allocation2 + $0x1f8] sm:$0xff]
  %v426 = vld [vmem:[#allocation2 + $0x200] sm:$0xff]
  %v427 = vld [vmem:[#allocation2 + $0x208] sm:$0xff]
  %v428 = vld [vmem:[#allocation2 + $0x210] sm:$0xff]
  %v429 = vld [vmem:[#allocation2 + $0x218] sm:$0xff]
  %v430 = vld [vmem:[#allocation2 + $0x220] sm:$0xff]
  %v431 = vld [vmem:[#allocation2 + $0x228] sm:$0xff]
  %v432 = vld [vmem:[#allocation2 + $0x230] sm:$0xff]
  %v433 = vld [vmem:[#allocation2 + $0x238] sm:$0xff]
  %v434 = vld [vmem:[#allocation2 + $0x240] sm:$0xff]
  %v435 = vld [vmem:[#allocation2 + $0x248] sm:$0xff]
  %v436 = vld [vmem:[#allocation2 + $0x250] sm:$0xff]
  %vm437 = vcmask 613376
  %v439 = vsel %vm437, %v97, 0
  %v442 = vsel %vm437, %v100, 0
  %v445 = vsel %vm437, %v103, 0
  %v448 = vsel %vm437, %v106, 0
  %v451 = vsel %vm437, %v109, 0
  %v454 = vsel %vm437, %v112, 0
  %v457 = vsel %vm437, %v115, 0
  %v460 = vsel %vm437, %v118, 0
  %v463 = vsel %vm437, %v121, 0
  %v466 = vsel %vm437, %v124, 0
  %v469 = vsel %vm437, %v127, 0
  %v472 = vsel %vm437, %v130, 0
  %v475 = vsel %vm437, %v133, 0
  %v478 = vsel %vm437, %v136, 0
  %v481 = vsel %vm437, %v139, 0
  %v484 = vsel %vm437, %v142, 0
  %v487 = vsel %vm437, %v145, 0
  %v490 = vsel %vm437, %v148, 0
  %v493 = vsel %vm437, %v151, 0
  %v496 = vsel %vm437, %v154, 0
  %v499 = vsel %vm437, %v157, 0
  %v502 = vsel %vm437, %v160, 0
  %v505 = vsel %vm437, %v163, 0
  %v508 = vsel %vm437, %v166, 0
  %v511 = vsel %vm437, %v169, 0
  %v514 = vsel %vm437, %v172, 0
  %v517 = vsel %vm437, %v175, 0
  %v520 = vsel %vm437, %v178, 0
  %v523 = vsel %vm437, %v181, 0
  %v526 = vsel %vm437, %v184, 0
  %v529 = vsel %vm437, %v187, 0
  %v532 = vsel %vm437, %v190, 0
  %v535 = vsel %vm437, %v193, 0
  %v538 = vsel %vm437, %v196, 0
  %v541 = vsel %vm437, %v199, 0
  %v544 = vsel %vm437, %v202, 0
  %v547 = vsel %vm437, %v205, 0
  %v550 = vsel %vm437, %v208, 0
  %v553 = vsel %vm437, %v211, 0
  %v556 = vsel %vm437, %v214, 0
  %v559 = vsel %vm437, %v217, 0
  %v562 = vsel %vm437, %v220, 0
  %v565 = vsel %vm437, %v223, 0
  %v568 = vsel %vm437, %v226, 0
  %v571 = vsel %vm437, %v229, 0
  %v574 = vsel %vm437, %v232, 0
  %v577 = vsel %vm437, %v235, 0
  %v580 = vsel %vm437, %v238, 0
  %v583 = vsel %vm437, %v241, 0
  %v586 = vsel %vm437, %v244, 0
  %v589 = vsel %vm437, %v247, 0
  %v592 = vsel %vm437, %v250, 0
  %v595 = vsel %vm437, %v253, 0
  %v598 = vsel %vm437, %v256, 0
  %v601 = vsel %vm437, %v259, 0
  %v604 = vsel %vm437, %v262, 0
  %v607 = vsel %vm437, %v265, 0
  %v610 = vsel %vm437, %v268, 0
  %v613 = vsel %vm437, %v271, 0
  %v616 = vsel %vm437, %v274, 0
  %v619 = vsel %vm437, %v277, 0
  %v622 = vsel %vm437, %v280, 0
  %v625 = vsel %vm437, %v283, 0
  %v628 = vsel %vm437, %v286, 0
  %v631 = vsel %vm437, %v289, 0
  %v634 = vsel %vm437, %v292, 0
  %v637 = vsel %vm437, %v295, 0
  %v640 = vsel %vm437, %v298, 0
  %v643 = vsel %vm437, %v301, 0
  %v646 = vsel %vm437, %v304, 0
  %v649 = vsel %vm437, %v307, 0
  %v652 = vsel %vm437, %v310, 0
  %v655 = vsel %vm437, %v313, 0
  %v658 = vsel %vm437, %v316, 0
  %v661 = vsel %vm437, %v319, 0
  %vm663 = vcmask 1042432
  %v665 = vsel %vm663, %v361, 0
  %667 = vmatprep.subr.mxu0 0.0
  %668 = vmatpush1.msra.mxu0 %v320
  %669 = vmatprep.subr.mxu0 0.0
  %670 = vmatpush1.msra.mxu0 %v321
  %671 = vmatprep.subr.mxu0 0.0
  %672 = vmatpush1.msra.mxu0 %v322
  %673 = vmatprep.subr.mxu0 0.0
  %674 = vmatpush1.msra.mxu0 %v323
  %675 = vmatprep.subr.mxu0 0.0
  %676 = vmatpush1.msra.mxu0 %v324
  %677 = vmatprep.subr.mxu0 0.0
  %678 = vmatpush1.msra.mxu0 %v325
  %679 = vmatprep.subr.mxu0 0.0
  %680 = vmatpush1.msra.mxu0 %v326
  %681 = vmatprep.subr.mxu0 0.0
  %682 = vmatpush1.msra.mxu0 %v327
  %683 = vmatprep.subr.mxu0 0.0
  %684 = vmatpush1.msra.mxu0 %v328
  %685 = vmatprep.subr.mxu0 0.0
  %686 = vmatpush1.msra.mxu0 %v329
  %687 = vmatprep.subr.mxu0 0.0
  %688 = vmatpush1.msra.mxu0 %v330
  %689 = vmatprep.subr.mxu0 0.0
  %690 = vmatpush1.msra.mxu0 %v331
  %691 = vmatprep.subr.mxu0 0.0
  %692 = vmatpush1.msra.mxu0 %v332
  %693 = vmatprep.subr.mxu0 0.0
  %694 = vmatpush1.msra.mxu0 %v333
  %695 = vmatprep.subr.mxu0 0.0
  %696 = vmatpush1.msra.mxu0 %v334
  %697 = vmatprep.subr.mxu0 0.0
  %698 = vmatpush1.msra.mxu0 %v335
  %699 = vmatprep.subr.mxu0 0.0
  %700 = vmatpush1.msra.mxu0 %v336
  %701 = vmatprep.subr.mxu0 0.0
  %702 = vmatpush1.msra.mxu0 %v337
  %703 = vmatprep.subr.mxu0 0.0
  %704 = vmatpush1.msra.mxu0 %v338
  %705 = vmatprep.subr.mxu0 0.0
  %706 = vmatpush1.msra.mxu0 %v339
  %707 = vmatprep.subr.mxu0 0.0
  %708 = vmatpush1.msra.mxu0 %v340
  %709 = vmatprep.subr.mxu0 0.0
  %710 = vmatpush1.msra.mxu0 %v341
  %711 = vmatprep.subr.mxu0 0.0
  %712 = vmatpush1.msra.mxu0 %v342
  %713 = vmatprep.subr.mxu0 0.0
  %714 = vmatpush1.msra.mxu0 %v343
  %715 = vmatprep.subr.mxu0 0.0
  %716 = vmatpush1.msra.mxu0 %v344
  %717 = vmatprep.subr.mxu0 0.0
  %718 = vmatpush1.msra.mxu0 %v345
  %719 = vmatprep.subr.mxu0 0.0
  %720 = vmatpush1.msra.mxu0 %v346
  %721 = vmatprep.subr.mxu0 0.0
  %722 = vmatpush1.msra.mxu0 %v347
  %723 = vmatprep.subr.mxu0 0.0
  %724 = vmatpush1.msra.mxu0 %v348
  %725 = vmatprep.subr.mxu0 0.0
  %726 = vmatpush1.msra.mxu0 %v349
  %727 = vmatprep.subr.mxu0 0.0
  %728 = vmatpush1.msra.mxu0 %v350
  %729 = vmatprep.subr.mxu0 0.0
  %730 = vmatpush1.msra.mxu0 %v351
  %731 = vmatprep.mubr.f32.mxu0 %v96
  %732 = vmatmul.mubr.f32.gmra.mrb[0].mxu0 %v95
  %v733 = vpop.f32.mrb[0].mxu0
  %v734 = vadd.f32 0.0, %v733
  %v735 = vpop.f32.mrb[0].mxu0
  %736 = vmatprep.mubr.f32.mxu0 %v99
  %737 = vmatmul.mubr.f32.gmra.mrb[0].mxu0 %v98
  %v738 = vpop.f32.mrb[0].mxu0
  %v739 = vadd.f32 0.0, %v738
  %v740 = vpop.f32.mrb[0].mxu0
  %741 = vmatprep.mubr.f32.mxu0 %v102
  %742 = vmatmul.mubr.f32.gmra.mrb[0].mxu0 %v101
  %v743 = vpop.f32.mrb[0].mxu0
  %v744 = vadd.f32 0.0, %v743
  %v745 = vpop.f32.mrb[0].mxu0
  %746 = vmatprep.mubr.f32.mxu0 %v105
  %747 = vmatmul.mubr.f32.gmra.mrb[0].mxu0 %v104
  %v748 = vpop.f32.mrb[0].mxu0
  %v749 = vadd.f32 0.0, %v748
  %v750 = vpop.f32.mrb[0].mxu0
  %751 = vmatprep.mubr.f32.mxu0 %v108
  %752 = vmatmul.mubr.f32.gmra.mrb[0].mxu0 %v107
  %v753 = vpop.f32.mrb[0].mxu0
  %v754 = vadd.f32 0.0, %v753
  %v755 = vpop.f32.mrb[0].mxu0
  %756 = vmatprep.mubr.f32.mxu0 %v111
  %757 = vmatmul.mubr.f32.gmra.mrb[0].mxu0 %v110
  %v758 = vpop.f32.mrb[0].mxu0
  %v759 = vadd.f32 0.0, %v758
  %v760 = vpop.f32.mrb[0].mxu0
  %761 = vmatprep.mubr.f32.mxu0 %v114
  %762 = vmatmul.mubr.f32.gmra.mrb[0].mxu0 %v113
  %v763 = vpop.f32.mrb[0].mxu0
  %v764 = vadd.f32 0.0, %v763
  %v765 = vpop.f32.mrb[0].mxu0
  %766 = vmatprep.mubr.f32.mxu0 %v117
  %767 = vmatmul.mubr.f32.gmra.mrb[0].mxu0 %v116
  %v768 = vpop.f32.mrb[0].mxu0
  %v769 = vadd.f32 0.0, %v768
  %v770 = vpop.f32.mrb[0].mxu0
  %771 = vmatprep.mubr.f32.mxu0 %v120
  %772 = vmatmul.mubr.f32.gmra.mrb[0].mxu0 %v119
  %v773 = vpop.f32.mrb[0].mxu0
  %v774 = vadd.f32 0.0, %v773
  %v775 = vpop.f32.mrb[0].mxu0
  %776 = vmatprep.mubr.f32.mxu0 %v123
  %777 = vmatmul.mubr.f32.gmra.mrb[0].mxu0 %v122
  %v778 = vpop.f32.mrb[0].mxu0
  %v779 = vadd.f32 0.0, %v778
  %v780 = vpop.f32.mrb[0].mxu0
  %781 = vmatprep.mubr.f32.mxu0 %v126
  %782 = vmatmul.mubr.f32.gmra.mrb[0].mxu0 %v125
  %v783 = vpop.f32.mrb[0].mxu0
  %v784 = vadd.f32 0.0, %v783
  %v785 = vpop.f32.mrb[0].mxu0
  %786 = vmatprep.mubr.f32.mxu0 %v129
  %787 = vmatmul.mubr.f32.gmra.mrb[0].mxu0 %v128
  %v788 = vpop.f32.mrb[0].mxu0
  %v789 = vadd.f32 0.0, %v788
  %v790 = vpop.f32.mrb[0].mxu0
  %791 = vmatprep.mubr.f32.mxu0 %v132
  %792 = vmatmul.mubr.f32.gmra.mrb[0].mxu0 %v131
  %v793 = vpop.f32.mrb[0].mxu0
  %v794 = vadd.f32 0.0, %v793
  %v795 = vpop.f32.mrb[0].mxu0
  %796 = vmatprep.mubr.f32.mxu0 %v135
  %797 = vmatmul.mubr.f32.gmra.mrb[0].mxu0 %v134
  %v798 = vpop.f32.mrb[0].mxu0
  %v799 = vadd.f32 0.0, %v798
  %v800 = vpop.f32.mrb[0].mxu0
  %801 = vmatprep.mubr.f32.mxu0 %v138
  %802 = vmatmul.mubr.f32.gmra.mrb[0].mxu0 %v137
  %v803 = vpop.f32.mrb[0].mxu0
  %v804 = vadd.f32 0.0, %v803
  %v805 = vpop.f32.mrb[0].mxu0
  %806 = vmatprep.mubr.f32.mxu0 %v141
  %807 = vmatmul.mubr.f32.gmra.mrb[0].mxu0 %v140
  %v808 = vpop.f32.mrb[0].mxu0
  %v809 = vadd.f32 0.0, %v808
  %v810 = vpop.f32.mrb[0].mxu0
  %811 = vmatprep.mubr.f32.mxu0 %v144
  %812 = vmatmul.mubr.f32.gmra.mrb[0].mxu0 %v143
  %v813 = vpop.f32.mrb[0].mxu0
  %v814 = vadd.f32 0.0, %v813
  %v815 = vpop.f32.mrb[0].mxu0
  %816 = vmatprep.mubr.f32.mxu0 %v147
  %817 = vmatmul.mubr.f32.gmra.mrb[0].mxu0 %v146
  %v818 = vpop.f32.mrb[0].mxu0
  %v819 = vadd.f32 0.0, %v818
  %v820 = vpop.f32.mrb[0].mxu0
  %821 = vmatprep.mubr.f32.mxu0 %v150
  %822 = vmatmul.mubr.f32.gmra.mrb[0].mxu0 %v149
  %v823 = vpop.f32.mrb[0].mxu0
  %v824 = vadd.f32 0.0, %v823
  %v825 = vpop.f32.mrb[0].mxu0
  %826 = vmatprep.mubr.f32.mxu0 %v153
  %827 = vmatmul.mubr.f32.gmra.mrb[0].mxu0 %v152
  %v828 = vpop.f32.mrb[0].mxu0
  %v829 = vadd.f32 0.0, %v828
  %v830 = vpop.f32.mrb[0].mxu0
  %831 = vmatprep.mubr.f32.mxu0 %v156
  %832 = vmatmul.mubr.f32.gmra.mrb[0].mxu0 %v155
  %v833 = vpop.f32.mrb[0].mxu0
  %v834 = vadd.f32 0.0, %v833
  %v835 = vpop.f32.mrb[0].mxu0
  %836 = vmatprep.mubr.f32.mxu0 %v159
  %837 = vmatmul.mubr.f32.gmra.mrb[0].mxu0 %v158
  %v838 = vpop.f32.mrb[0].mxu0
  %v839 = vadd.f32 0.0, %v838
  %v840 = vpop.f32.mrb[0].mxu0
  %841 = vmatprep.mubr.f32.mxu0 %v162
  %842 = vmatmul.mubr.f32.gmra.mrb[0].mxu0 %v161
  %v843 = vpop.f32.mrb[0].mxu0
  %v844 = vadd.f32 0.0, %v843
  %v845 = vpop.f32.mrb[0].mxu0
  %846 = vmatprep.mubr.f32.mxu0 %v165
  %847 = vmatmul.mubr.f32.gmra.mrb[0].mxu0 %v164
  %v848 = vpop.f32.mrb[0].mxu0
  %v849 = vadd.f32 0.0, %v848
  %v850 = vpop.f32.mrb[0].mxu0
  %851 = vmatprep.mubr.f32.mxu0 %v168
  %852 = vmatmul.mubr.f32.gmra.mrb[0].mxu0 %v167
  %v853 = vpop.f32.mrb[0].mxu0
  %v854 = vadd.f32 0.0, %v853
  %v855 = vpop.f32.mrb[0].mxu0
  %856 = vmatprep.mubr.f32.mxu0 %v171
  %857 = vmatmul.mubr.f32.gmra.mrb[0].mxu0 %v170
  %v858 = vpop.f32.mrb[0].mxu0
  %v859 = vadd.f32 0.0, %v858
  %v860 = vpop.f32.mrb[0].mxu0
  %861 = vmatprep.mubr.f32.mxu0 %v174
  %862 = vmatmul.mubr.f32.gmra.mrb[0].mxu0 %v173
  %v863 = vpop.f32.mrb[0].mxu0
  %v864 = vadd.f32 0.0, %v863
  %v865 = vpop.f32.mrb[0].mxu0
  %866 = vmatprep.mubr.f32.mxu0 %v177
  %867 = vmatmul.mubr.f32.gmra.mrb[0].mxu0 %v176
  %v868 = vpop.f32.mrb[0].mxu0
  %v869 = vadd.f32 0.0, %v868
  %v870 = vpop.f32.mrb[0].mxu0
  %871 = vmatprep.mubr.f32.mxu0 %v180
  %872 = vmatmul.mubr.f32.gmra.mrb[0].mxu0 %v179
  %v873 = vpop.f32.mrb[0].mxu0
  %v874 = vadd.f32 0.0, %v873
  %v875 = vpop.f32.mrb[0].mxu0
  %876 = vmatprep.mubr.f32.mxu0 %v183
  %877 = vmatmul.mubr.f32.gmra.mrb[0].mxu0 %v182
  %v878 = vpop.f32.mrb[0].mxu0
  %v879 = vadd.f32 0.0, %v878
  %v880 = vpop.f32.mrb[0].mxu0
  %881 = vmatprep.mubr.f32.mxu0 %v186
  %882 = vmatmul.mubr.f32.gmra.mrb[0].mxu0 %v185
  %v883 = vpop.f32.mrb[0].mxu0
  %v884 = vadd.f32 0.0, %v883
  %v885 = vpop.f32.mrb[0].mxu0
  %886 = vmatprep.mubr.f32.mxu0 %v189
  %887 = vmatmul.mubr.f32.gmra.mrb[0].mxu0 %v188
  %v888 = vpop.f32.mrb[0].mxu0
  %v889 = vadd.f32 0.0, %v888
  %v890 = vpop.f32.mrb[0].mxu0
  %891 = vmatprep.mubr.f32.mxu0 %v192
  %892 = vmatmul.mubr.f32.gmra.mrb[0].mxu0 %v191
  %v893 = vpop.f32.mrb[0].mxu0
  %v894 = vadd.f32 0.0, %v893
  %v895 = vpop.f32.mrb[0].mxu0
  %896 = vmatprep.mubr.f32.mxu0 %v195
  %897 = vmatmul.mubr.f32.gmra.mrb[0].mxu0 %v194
  %v898 = vpop.f32.mrb[0].mxu0
  %v899 = vadd.f32 0.0, %v898
  %v900 = vpop.f32.mrb[0].mxu0
  %901 = vmatprep.mubr.f32.mxu0 %v198
  %902 = vmatmul.mubr.f32.gmra.mrb[0].mxu0 %v197
  %v903 = vpop.f32.mrb[0].mxu0
  %v904 = vadd.f32 0.0, %v903
  %v905 = vpop.f32.mrb[0].mxu0
  %906 = vmatprep.mubr.f32.mxu0 %v201
  %907 = vmatmul.mubr.f32.gmra.mrb[0].mxu0 %v200
  %v908 = vpop.f32.mrb[0].mxu0
  %v909 = vadd.f32 0.0, %v908
  %v910 = vpop.f32.mrb[0].mxu0
  %911 = vmatprep.mubr.f32.mxu0 %v204
  %912 = vmatmul.mubr.f32.gmra.mrb[0].mxu0 %v203
  %v913 = vpop.f32.mrb[0].mxu0
  %v914 = vadd.f32 0.0, %v913
  %v915 = vpop.f32.mrb[0].mxu0
  %916 = vmatprep.mubr.f32.mxu0 %v207
  %917 = vmatmul.mubr.f32.gmra.mrb[0].mxu0 %v206
  %v918 = vpop.f32.mrb[0].mxu0
  %v919 = vadd.f32 0.0, %v918
  %v920 = vpop.f32.mrb[0].mxu0
  %921 = vmatprep.mubr.f32.mxu0 %v210
  %922 = vmatmul.mubr.f32.gmra.mrb[0].mxu0 %v209
  %v923 = vpop.f32.mrb[0].mxu0
  %v924 = vadd.f32 0.0, %v923
  %v925 = vpop.f32.mrb[0].mxu0
  %926 = vmatprep.mubr.f32.mxu0 %v213
  %927 = vmatmul.mubr.f32.gmra.mrb[0].mxu0 %v212
  %v928 = vpop.f32.mrb[0].mxu0
  %v929 = vadd.f32 0.0, %v928
  %v930 = vpop.f32.mrb[0].mxu0
  %931 = vmatprep.mubr.f32.mxu0 %v216
  %932 = vmatmul.mubr.f32.gmra.mrb[0].mxu0 %v215
  %v933 = vpop.f32.mrb[0].mxu0
  %v934 = vadd.f32 0.0, %v933
  %v935 = vpop.f32.mrb[0].mxu0
  %936 = vmatprep.mubr.f32.mxu0 %v219
  %937 = vmatmul.mubr.f32.gmra.mrb[0].mxu0 %v218
  %v938 = vpop.f32.mrb[0].mxu0
  %v939 = vadd.f32 0.0, %v938
  %v940 = vpop.f32.mrb[0].mxu0
  %941 = vmatprep.mubr.f32.mxu0 %v222
  %942 = vmatmul.mubr.f32.gmra.mrb[0].mxu0 %v221
  %v943 = vpop.f32.mrb[0].mxu0
  %v944 = vadd.f32 0.0, %v943
  %v945 = vpop.f32.mrb[0].mxu0
  %946 = vmatprep.mubr.f32.mxu0 %v225
  %947 = vmatmul.mubr.f32.gmra.mrb[0].mxu0 %v224
  %v948 = vpop.f32.mrb[0].mxu0
  %v949 = vadd.f32 0.0, %v948
  %v950 = vpop.f32.mrb[0].mxu0
  %951 = vmatprep.mubr.f32.mxu0 %v228
  %952 = vmatmul.mubr.f32.gmra.mrb[0].mxu0 %v227
  %v953 = vpop.f32.mrb[0].mxu0
  %v954 = vadd.f32 0.0, %v953
  %v955 = vpop.f32.mrb[0].mxu0
  %956 = vmatprep.mubr.f32.mxu0 %v231
  %957 = vmatmul.mubr.f32.gmra.mrb[0].mxu0 %v230
  %v958 = vpop.f32.mrb[0].mxu0
  %v959 = vadd.f32 0.0, %v958
  %v960 = vpop.f32.mrb[0].mxu0
  %961 = vmatprep.mubr.f32.mxu0 %v234
  %962 = vmatmul.mubr.f32.gmra.mrb[0].mxu0 %v233
  %v963 = vpop.f32.mrb[0].mxu0
  %v964 = vadd.f32 0.0, %v963
  %v965 = vpop.f32.mrb[0].mxu0
  %966 = vmatprep.mubr.f32.mxu0 %v237
  %967 = vmatmul.mubr.f32.gmra.mrb[0].mxu0 %v236
  %v968 = vpop.f32.mrb[0].mxu0
  %v969 = vadd.f32 0.0, %v968
  %v970 = vpop.f32.mrb[0].mxu0
  %971 = vmatprep.mubr.f32.mxu0 %v240
  %972 = vmatmul.mubr.f32.gmra.mrb[0].mxu0 %v239
  %v973 = vpop.f32.mrb[0].mxu0
  %v974 = vadd.f32 0.0, %v973
  %v975 = vpop.f32.mrb[0].mxu0
  %976 = vmatprep.mubr.f32.mxu0 %v243
  %977 = vmatmul.mubr.f32.gmra.mrb[0].mxu0 %v242
  %v978 = vpop.f32.mrb[0].mxu0
  %v979 = vadd.f32 0.0, %v978
  %v980 = vpop.f32.mrb[0].mxu0
  %981 = vmatprep.mubr.f32.mxu0 %v246
  %982 = vmatmul.mubr.f32.gmra.mrb[0].mxu0 %v245
  %v983 = vpop.f32.mrb[0].mxu0
  %v984 = vadd.f32 0.0, %v983
  %v985 = vpop.f32.mrb[0].mxu0
  %986 = vmatprep.mubr.f32.mxu0 %v249
  %987 = vmatmul.mubr.f32.gmra.mrb[0].mxu0 %v248
  %v988 = vpop.f32.mrb[0].mxu0
  %v989 = vadd.f32 0.0, %v988
  %v990 = vpop.f32.mrb[0].mxu0
  %991 = vmatprep.mubr.f32.mxu0 %v252
  %992 = vmatmul.mubr.f32.gmra.mrb[0].mxu0 %v251
  %v993 = vpop.f32.mrb[0].mxu0
  %v994 = vadd.f32 0.0, %v993
  %v995 = vpop.f32.mrb[0].mxu0
  %996 = vmatprep.mubr.f32.mxu0 %v255
  %997 = vmatmul.mubr.f32.gmra.mrb[0].mxu0 %v254
  %v998 = vpop.f32.mrb[0].mxu0
  %v999 = vadd.f32 0.0, %v998
  %v1000 = vpop.f32.mrb[0].mxu0
  %1001 = vmatprep.mubr.f32.mxu0 %v258
  %1002 = vmatmul.mubr.f32.gmra.mrb[0].mxu0 %v257
  %v1003 = vpop.f32.mrb[0].mxu0
  %v1004 = vadd.f32 0.0, %v1003
  %v1005 = vpop.f32.mrb[0].mxu0
  %1006 = vmatprep.mubr.f32.mxu0 %v261
  %1007 = vmatmul.mubr.f32.gmra.mrb[0].mxu0 %v260
  %v1008 = vpop.f32.mrb[0].mxu0
  %v1009 = vadd.f32 0.0, %v1008
  %v1010 = vpop.f32.mrb[0].mxu0
  %1011 = vmatprep.mubr.f32.mxu0 %v264
  %1012 = vmatmul.mubr.f32.gmra.mrb[0].mxu0 %v263
  %v1013 = vpop.f32.mrb[0].mxu0
  %v1014 = vadd.f32 0.0, %v1013
  %v1015 = vpop.f32.mrb[0].mxu0
  %1016 = vmatprep.mubr.f32.mxu0 %v267
  %1017 = vmatmul.mubr.f32.gmra.mrb[0].mxu0 %v266
  %v1018 = vpop.f32.mrb[0].mxu0
  %v1019 = vadd.f32 0.0, %v1018
  %v1020 = vpop.f32.mrb[0].mxu0
  %1021 = vmatprep.mubr.f32.mxu0 %v270
  %1022 = vmatmul.mubr.f32.gmra.mrb[0].mxu0 %v269
  %v1023 = vpop.f32.mrb[0].mxu0
  %v1024 = vadd.f32 0.0, %v1023
  %v1025 = vpop.f32.mrb[0].mxu0
  %1026 = vmatprep.mubr.f32.mxu0 %v273
  %1027 = vmatmul.mubr.f32.gmra.mrb[0].mxu0 %v272
  %v1028 = vpop.f32.mrb[0].mxu0
  %v1029 = vadd.f32 0.0, %v1028
  %v1030 = vpop.f32.mrb[0].mxu0
  %1031 = vmatprep.mubr.f32.mxu0 %v276
  %1032 = vmatmul.mubr.f32.gmra.mrb[0].mxu0 %v275
  %v1033 = vpop.f32.mrb[0].mxu0
  %v1034 = vadd.f32 0.0, %v1033
  %v1035 = vpop.f32.mrb[0].mxu0
  %1036 = vmatprep.mubr.f32.mxu0 %v279
  %1037 = vmatmul.mubr.f32.gmra.mrb[0].mxu0 %v278
  %v1038 = vpop.f32.mrb[0].mxu0
  %v1039 = vadd.f32 0.0, %v1038
  %v1040 = vpop.f32.mrb[0].mxu0
  %1041 = vmatprep.mubr.f32.mxu0 %v282
  %1042 = vmatmul.mubr.f32.gmra.mrb[0].mxu0 %v281
  %v1043 = vpop.f32.mrb[0].mxu0
  %v1044 = vadd.f32 0.0, %v1043
  %v1045 = vpop.f32.mrb[0].mxu0
  %1046 = vmatprep.mubr.f32.mxu0 %v285
  %1047 = vmatmul.mubr.f32.gmra.mrb[0].mxu0 %v284
  %v1048 = vpop.f32.mrb[0].mxu0
  %v1049 = vadd.f32 0.0, %v1048
  %v1050 = vpop.f32.mrb[0].mxu0
  %1051 = vmatprep.mubr.f32.mxu0 %v288
  %1052 = vmatmul.mubr.f32.gmra.mrb[0].mxu0 %v287
  %v1053 = vpop.f32.mrb[0].mxu0
  %v1054 = vadd.f32 0.0, %v1053
  %v1055 = vpop.f32.mrb[0].mxu0
  %1056 = vmatprep.mubr.f32.mxu0 %v291
  %1057 = vmatmul.mubr.f32.gmra.mrb[0].mxu0 %v290
  %v1058 = vpop.f32.mrb[0].mxu0
  %v1059 = vadd.f32 0.0, %v1058
  %v1060 = vpop.f32.mrb[0].mxu0
  %1061 = vmatprep.mubr.f32.mxu0 %v294
  %1062 = vmatmul.mubr.f32.gmra.mrb[0].mxu0 %v293
  %v1063 = vpop.f32.mrb[0].mxu0
  %v1064 = vadd.f32 0.0, %v1063
  %v1065 = vpop.f32.mrb[0].mxu0
  %1066 = vmatprep.mubr.f32.mxu0 %v297
  %1067 = vmatmul.mubr.f32.gmra.mrb[0].mxu0 %v296
  %v1068 = vpop.f32.mrb[0].mxu0
  %v1069 = vadd.f32 0.0, %v1068
  %v1070 = vpop.f32.mrb[0].mxu0
  %1071 = vmatprep.mubr.f32.mxu0 %v300
  %1072 = vmatmul.mubr.f32.gmra.mrb[0].mxu0 %v299
  %v1073 = vpop.f32.mrb[0].mxu0
  %v1074 = vadd.f32 0.0, %v1073
  %v1075 = vpop.f32.mrb[0].mxu0
  %1076 = vmatprep.mubr.f32.mxu0 %v303
  %1077 = vmatmul.mubr.f32.gmra.mrb[0].mxu0 %v302
  %v1078 = vpop.f32.mrb[0].mxu0
  %v1079 = vadd.f32 0.0, %v1078
  %v1080 = vpop.f32.mrb[0].mxu0
  %1081 = vmatprep.mubr.f32.mxu0 %v306
  %1082 = vmatmul.mubr.f32.gmra.mrb[0].mxu0 %v305
  %v1083 = vpop.f32.mrb[0].mxu0
  %v1084 = vadd.f32 0.0, %v1083
  %v1085 = vpop.f32.mrb[0].mxu0
  %1086 = vmatprep.mubr.f32.mxu0 %v309
  %1087 = vmatmul.mubr.f32.gmra.mrb[0].mxu0 %v308
  %v1088 = vpop.f32.mrb[0].mxu0
  %v1089 = vadd.f32 0.0, %v1088
  %v1090 = vpop.f32.mrb[0].mxu0
  %1091 = vmatprep.mubr.f32.mxu0 %v312
  %1092 = vmatmul.mubr.f32.gmra.mrb[0].mxu0 %v311
  %v1093 = vpop.f32.mrb[0].mxu0
  %v1094 = vadd.f32 0.0, %v1093
  %v1095 = vpop.f32.mrb[0].mxu0
  %1096 = vmatprep.mubr.f32.mxu0 %v315
  %1097 = vmatmul.mubr.f32.gmra.mrb[0].mxu0 %v314
  %v1098 = vpop.f32.mrb[0].mxu0
  %v1099 = vadd.f32 0.0, %v1098
  %v1100 = vpop.f32.mrb[0].mxu0
  %1101 = vmatprep.mubr.f32.mxu0 %v318
  %1102 = vmatmul.mubr.f32.gmra.mrb[0].mxu0 %v317
  %v1103 = vpop.f32.mrb[0].mxu0
  %v1104 = vadd.f32 0.0, %v1103
  %v1105 = vpop.f32.mrb[0].mxu0
  %1106 = vdwg.mxu0
  %1107 = vmatprep.subr.mxu0 0.0
  %1108 = vmatpush1.msra.mxu0 %v352
  %1109 = vmatprep.subr.mxu0 0.0
  %1110 = vmatpush1.msra.mxu0 %v353
  %1111 = vmatprep.subr.mxu0 0.0
  %1112 = vmatpush1.msra.mxu0 %v354
  %1113 = vmatprep.subr.mxu0 0.0
  %1114 = vmatpush1.msra.mxu0 %v355
  %1115 = vmatprep.subr.mxu0 0.0
  %1116 = vmatpush1.msra.mxu0 %v356
  %1117 = vmatprep.subr.mxu0 0.0
  %1118 = vmatpush1.msra.mxu0 %v357
  %1119 = vmatprep.subr.mxu0 0.0
  %1120 = vmatpush1.msra.mxu0 %v358
  %1121 = vmatprep.subr.mxu0 0.0
  %1122 = vmatpush1.msra.mxu0 %v359
  %1123 = vmatprep.subr.mxu0 0.0
  %1124 = vmatpush1.msra.mxu0 %v360
  %1125 = vmatprep.subr.mxu0 0.0
  %1126 = vmatpush1.msra.mxu0 %v665
  %1127 = vmatprep.subr.mxu0 0.0
  %1128 = vmatpush1.msra.mxu0 0.0
  %1129 = vmatprep.subr.mxu0 0.0
  %1130 = vmatpush1.msra.mxu0 0.0
  %1131 = vmatprep.subr.mxu0 0.0
  %1132 = vmatpush1.msra.mxu0 0.0
  %1133 = vmatprep.subr.mxu0 0.0
  %1134 = vmatpush1.msra.mxu0 0.0
  %1135 = vmatprep.subr.mxu0 0.0
  %1136 = vmatpush1.msra.mxu0 0.0
  %1137 = vmatprep.subr.mxu0 0.0
  %1138 = vmatpush1.msra.mxu0 0.0
  %1139 = vmatprep.subr.mxu0 0.0
  %1140 = vmatpush1.msra.mxu0 0.0
  %1141 = vmatprep.subr.mxu0 0.0
  %1142 = vmatpush1.msra.mxu0 0.0
  %1143 = vmatprep.subr.mxu0 0.0
  %1144 = vmatpush1.msra.mxu0 0.0
  %1145 = vmatprep.subr.mxu0 0.0
  %1146 = vmatpush1.msra.mxu0 0.0
  %1147 = vmatprep.subr.mxu0 0.0
  %1148 = vmatpush1.msra.mxu0 0.0
  %1149 = vmatprep.subr.mxu0 0.0
  %1150 = vmatpush1.msra.mxu0 0.0
  %1151 = vmatprep.subr.mxu0 0.0
  %1152 = vmatpush1.msra.mxu0 0.0
  %1153 = vmatprep.subr.mxu0 0.0
  %1154 = vmatpush1.msra.mxu0 0.0
  %1155 = vmatprep.subr.mxu0 0.0
  %1156 = vmatpush1.msra.mxu0 0.0
  %1157 = vmatprep.subr.mxu0 0.0
  %1158 = vmatpush1.msra.mxu0 0.0
  %1159 = vmatprep.subr.mxu0 0.0
  %1160 = vmatpush1.msra.mxu0 0.0
  %1161 = vmatprep.subr.mxu0 0.0
  %1162 = vmatpush1.msra.mxu0 0.0
  %1163 = vmatprep.subr.mxu0 0.0
  %1164 = vmatpush1.msra.mxu0 0.0
  %1165 = vmatprep.subr.mxu0 0.0
  %1166 = vmatpush1.msra.mxu0 0.0
  %1167 = vmatprep.subr.mxu0 0.0
  %1168 = vmatpush1.msra.mxu0 0.0
  %1169 = vmatprep.subr.mxu0 0.0
  %1170 = vmatpush1.msra.mxu0 0.0
  %1171 = vmatprep.mubr.f32.mxu0 0.0
  %1172 = vmatmul.mubr.f32.gmra.mrb[0].mxu0 %v439
  %v1173 = vpop.f32.mrb[0].mxu0
  %v1174 = vadd.f32 %v734, %v1173
  %v1175 = vpop.f32.mrb[0].mxu0
  %1176 = vmatprep.mubr.f32.mxu0 0.0
  %1177 = vmatmul.mubr.f32.gmra.mrb[0].mxu0 %v442
  %v1178 = vpop.f32.mrb[0].mxu0
  %v1179 = vadd.f32 %v739, %v1178
  %v1180 = vpop.f32.mrb[0].mxu0
  %1181 = vmatprep.mubr.f32.mxu0 0.0
  %1182 = vmatmul.mubr.f32.gmra.mrb[0].mxu0 %v445
  %v1183 = vpop.f32.mrb[0].mxu0
  %v1184 = vadd.f32 %v744, %v1183
  %v1185 = vpop.f32.mrb[0].mxu0
  %1186 = vmatprep.mubr.f32.mxu0 0.0
  %1187 = vmatmul.mubr.f32.gmra.mrb[0].mxu0 %v448
  %v1188 = vpop.f32.mrb[0].mxu0
  %v1189 = vadd.f32 %v749, %v1188
  %v1190 = vpop.f32.mrb[0].mxu0
  %1191 = vmatprep.mubr.f32.mxu0 0.0
  %1192 = vmatmul.mubr.f32.gmra.mrb[0].mxu0 %v451
  %v1193 = vpop.f32.mrb[0].mxu0
  %v1194 = vadd.f32 %v754, %v1193
  %v1195 = vpop.f32.mrb[0].mxu0
  %1196 = vmatprep.mubr.f32.mxu0 0.0
  %1197 = vmatmul.mubr.f32.gmra.mrb[0].mxu0 %v454
  %v1198 = vpop.f32.mrb[0].mxu0
  %v1199 = vadd.f32 %v759, %v1198
  %v1200 = vpop.f32.mrb[0].mxu0
  %1201 = vmatprep.mubr.f32.mxu0 0.0
  %1202 = vmatmul.mubr.f32.gmra.mrb[0].mxu0 %v457
  %v1203 = vpop.f32.mrb[0].mxu0
  %v1204 = vadd.f32 %v764, %v1203
  %v1205 = vpop.f32.mrb[0].mxu0
  %1206 = vmatprep.mubr.f32.mxu0 0.0
  %1207 = vmatmul.mubr.f32.gmra.mrb[0].mxu0 %v460
  %v1208 = vpop.f32.mrb[0].mxu0
  %v1209 = vadd.f32 %v769, %v1208
  %v1210 = vpop.f32.mrb[0].mxu0
  %1211 = vmatprep.mubr.f32.mxu0 0.0
  %1212 = vmatmul.mubr.f32.gmra.mrb[0].mxu0 %v463
  %v1213 = vpop.f32.mrb[0].mxu0
  %v1214 = vadd.f32 %v774, %v1213
  %v1215 = vpop.f32.mrb[0].mxu0
  %1216 = vmatprep.mubr.f32.mxu0 0.0
  %1217 = vmatmul.mubr.f32.gmra.mrb[0].mxu0 %v466
  %v1218 = vpop.f32.mrb[0].mxu0
  %v1219 = vadd.f32 %v779, %v1218
  %v1220 = vpop.f32.mrb[0].mxu0
  %1221 = vmatprep.mubr.f32.mxu0 0.0
  %1222 = vmatmul.mubr.f32.gmra.mrb[0].mxu0 %v469
  %v1223 = vpop.f32.mrb[0].mxu0
  %v1224 = vadd.f32 %v784, %v1223
  %v1225 = vpop.f32.mrb[0].mxu0
  %1226 = vmatprep.mubr.f32.mxu0 0.0
  %1227 = vmatmul.mubr.f32.gmra.mrb[0].mxu0 %v472
  %v1228 = vpop.f32.mrb[0].mxu0
  %v1229 = vadd.f32 %v789, %v1228
  %v1230 = vpop.f32.mrb[0].mxu0
  %1231 = vmatprep.mubr.f32.mxu0 0.0
  %1232 = vmatmul.mubr.f32.gmra.mrb[0].mxu0 %v475
  %v1233 = vpop.f32.mrb[0].mxu0
  %v1234 = vadd.f32 %v794, %v1233
  %v1235 = vpop.f32.mrb[0].mxu0
  %1236 = vmatprep.mubr.f32.mxu0 0.0
  %1237 = vmatmul.mubr.f32.gmra.mrb[0].mxu0 %v478
  %v1238 = vpop.f32.mrb[0].mxu0
  %v1239 = vadd.f32 %v799, %v1238
  %v1240 = vpop.f32.mrb[0].mxu0
  %1241 = vmatprep.mubr.f32.mxu0 0.0
  %1242 = vmatmul.mubr.f32.gmra.mrb[0].mxu0 %v481
  %v1243 = vpop.f32.mrb[0].mxu0
  %v1244 = vadd.f32 %v804, %v1243
  %v1245 = vpop.f32.mrb[0].mxu0
  %1246 = vmatprep.mubr.f32.mxu0 0.0
  %1247 = vmatmul.mubr.f32.gmra.mrb[0].mxu0 %v484
  %v1248 = vpop.f32.mrb[0].mxu0
  %v1249 = vadd.f32 %v809, %v1248
  %v1250 = vpop.f32.mrb[0].mxu0
  %1251 = vmatprep.mubr.f32.mxu0 0.0
  %1252 = vmatmul.mubr.f32.gmra.mrb[0].mxu0 %v487
  %v1253 = vpop.f32.mrb[0].mxu0
  %v1254 = vadd.f32 %v814, %v1253
  %v1255 = vpop.f32.mrb[0].mxu0
  %1256 = vmatprep.mubr.f32.mxu0 0.0
  %1257 = vmatmul.mubr.f32.gmra.mrb[0].mxu0 %v490
  %v1258 = vpop.f32.mrb[0].mxu0
  %v1259 = vadd.f32 %v819, %v1258
  %v1260 = vpop.f32.mrb[0].mxu0
  %1261 = vmatprep.mubr.f32.mxu0 0.0
  %1262 = vmatmul.mubr.f32.gmra.mrb[0].mxu0 %v493
  %v1263 = vpop.f32.mrb[0].mxu0
  %v1264 = vadd.f32 %v824, %v1263
  %v1265 = vpop.f32.mrb[0].mxu0
  %1266 = vmatprep.mubr.f32.mxu0 0.0
  %1267 = vmatmul.mubr.f32.gmra.mrb[0].mxu0 %v496
  %v1268 = vpop.f32.mrb[0].mxu0
  %v1269 = vadd.f32 %v829, %v1268
  %v1270 = vpop.f32.mrb[0].mxu0
  %1271 = vmatprep.mubr.f32.mxu0 0.0
  %1272 = vmatmul.mubr.f32.gmra.mrb[0].mxu0 %v499
  %v1273 = vpop.f32.mrb[0].mxu0
  %v1274 = vadd.f32 %v834, %v1273
  %v1275 = vpop.f32.mrb[0].mxu0
  %1276 = vmatprep.mubr.f32.mxu0 0.0
  %1277 = vmatmul.mubr.f32.gmra.mrb[0].mxu0 %v502
  %v1278 = vpop.f32.mrb[0].mxu0
  %v1279 = vadd.f32 %v839, %v1278
  %v1280 = vpop.f32.mrb[0].mxu0
  %1281 = vmatprep.mubr.f32.mxu0 0.0
  %1282 = vmatmul.mubr.f32.gmra.mrb[0].mxu0 %v505
  %v1283 = vpop.f32.mrb[0].mxu0
  %v1284 = vadd.f32 %v844, %v1283
  %v1285 = vpop.f32.mrb[0].mxu0
  %1286 = vmatprep.mubr.f32.mxu0 0.0
  %1287 = vmatmul.mubr.f32.gmra.mrb[0].mxu0 %v508
  %v1288 = vpop.f32.mrb[0].mxu0
  %v1289 = vadd.f32 %v849, %v1288
  %v1290 = vpop.f32.mrb[0].mxu0
  %1291 = vmatprep.mubr.f32.mxu0 0.0
  %1292 = vmatmul.mubr.f32.gmra.mrb[0].mxu0 %v511
  %v1293 = vpop.f32.mrb[0].mxu0
  %v1294 = vadd.f32 %v854, %v1293
  %v1295 = vpop.f32.mrb[0].mxu0
  %1296 = vmatprep.mubr.f32.mxu0 0.0
  %1297 = vmatmul.mubr.f32.gmra.mrb[0].mxu0 %v514
  %v1298 = vpop.f32.mrb[0].mxu0
  %v1299 = vadd.f32 %v859, %v1298
  %v1300 = vpop.f32.mrb[0].mxu0
  %1301 = vmatprep.mubr.f32.mxu0 0.0
  %1302 = vmatmul.mubr.f32.gmra.mrb[0].mxu0 %v517
  %v1303 = vpop.f32.mrb[0].mxu0
  %v1304 = vadd.f32 %v864, %v1303
  %v1305 = vpop.f32.mrb[0].mxu0
  %1306 = vmatprep.mubr.f32.mxu0 0.0
  %1307 = vmatmul.mubr.f32.gmra.mrb[0].mxu0 %v520
  %v1308 = vpop.f32.mrb[0].mxu0
  %v1309 = vadd.f32 %v869, %v1308
  %v1310 = vpop.f32.mrb[0].mxu0
  %1311 = vmatprep.mubr.f32.mxu0 0.0
  %1312 = vmatmul.mubr.f32.gmra.mrb[0].mxu0 %v523
  %v1313 = vpop.f32.mrb[0].mxu0
  %v1314 = vadd.f32 %v874, %v1313
  %v1315 = vpop.f32.mrb[0].mxu0
  %1316 = vmatprep.mubr.f32.mxu0 0.0
  %1317 = vmatmul.mubr.f32.gmra.mrb[0].mxu0 %v526
  %v1318 = vpop.f32.mrb[0].mxu0
  %v1319 = vadd.f32 %v879, %v1318
  %v1320 = vpop.f32.mrb[0].mxu0
  %1321 = vmatprep.mubr.f32.mxu0 0.0
  %1322 = vmatmul.mubr.f32.gmra.mrb[0].mxu0 %v529
  %v1323 = vpop.f32.mrb[0].mxu0
  %v1324 = vadd.f32 %v884, %v1323
  %v1325 = vpop.f32.mrb[0].mxu0
  %1326 = vmatprep.mubr.f32.mxu0 0.0
  %1327 = vmatmul.mubr.f32.gmra.mrb[0].mxu0 %v532
  %v1328 = vpop.f32.mrb[0].mxu0
  %v1329 = vadd.f32 %v889, %v1328
  %v1330 = vpop.f32.mrb[0].mxu0
  %1331 = vmatprep.mubr.f32.mxu0 0.0
  %1332 = vmatmul.mubr.f32.gmra.mrb[0].mxu0 %v535
  %v1333 = vpop.f32.mrb[0].mxu0
  %v1334 = vadd.f32 %v894, %v1333
  %v1335 = vpop.f32.mrb[0].mxu0
  %1336 = vmatprep.mubr.f32.mxu0 0.0
  %1337 = vmatmul.mubr.f32.gmra.mrb[0].mxu0 %v538
  %v1338 = vpop.f32.mrb[0].mxu0
  %v1339 = vadd.f32 %v899, %v1338
  %v1340 = vpop.f32.mrb[0].mxu0
  %1341 = vmatprep.mubr.f32.mxu0 0.0
  %1342 = vmatmul.mubr.f32.gmra.mrb[0].mxu0 %v541
  %v1343 = vpop.f32.mrb[0].mxu0
  %v1344 = vadd.f32 %v904, %v1343
  %v1345 = vpop.f32.mrb[0].mxu0
  %1346 = vmatprep.mubr.f32.mxu0 0.0
  %1347 = vmatmul.mubr.f32.gmra.mrb[0].mxu0 %v544
  %v1348 = vpop.f32.mrb[0].mxu0
  %v1349 = vadd.f32 %v909, %v1348
  %v1350 = vpop.f32.mrb[0].mxu0
  %1351 = vmatprep.mubr.f32.mxu0 0.0
  %1352 = vmatmul.mubr.f32.gmra.mrb[0].mxu0 %v547
  %v1353 = vpop.f32.mrb[0].mxu0
  %v1354 = vadd.f32 %v914, %v1353
  %v1355 = vpop.f32.mrb[0].mxu0
  %1356 = vmatprep.mubr.f32.mxu0 0.0
  %1357 = vmatmul.mubr.f32.gmra.mrb[0].mxu0 %v550
  %v1358 = vpop.f32.mrb[0].mxu0
  %v1359 = vadd.f32 %v919, %v1358
  %v1360 = vpop.f32.mrb[0].mxu0
  %1361 = vmatprep.mubr.f32.mxu0 0.0
  %1362 = vmatmul.mubr.f32.gmra.mrb[0].mxu0 %v553
  %v1363 = vpop.f32.mrb[0].mxu0
  %v1364 = vadd.f32 %v924, %v1363
  %v1365 = vpop.f32.mrb[0].mxu0
  %1366 = vmatprep.mubr.f32.mxu0 0.0
  %1367 = vmatmul.mubr.f32.gmra.mrb[0].mxu0 %v556
  %v1368 = vpop.f32.mrb[0].mxu0
  %v1369 = vadd.f32 %v929, %v1368
  %v1370 = vpop.f32.mrb[0].mxu0
  %1371 = vmatprep.mubr.f32.mxu0 0.0
  %1372 = vmatmul.mubr.f32.gmra.mrb[0].mxu0 %v559
  %v1373 = vpop.f32.mrb[0].mxu0
  %v1374 = vadd.f32 %v934, %v1373
  %v1375 = vpop.f32.mrb[0].mxu0
  %1376 = vmatprep.mubr.f32.mxu0 0.0
  %1377 = vmatmul.mubr.f32.gmra.mrb[0].mxu0 %v562
  %v1378 = vpop.f32.mrb[0].mxu0
  %v1379 = vadd.f32 %v939, %v1378
  %v1380 = vpop.f32.mrb[0].mxu0
  %1381 = vmatprep.mubr.f32.mxu0 0.0
  %1382 = vmatmul.mubr.f32.gmra.mrb[0].mxu0 %v565
  %v1383 = vpop.f32.mrb[0].mxu0
  %v1384 = vadd.f32 %v944, %v1383
  %v1385 = vpop.f32.mrb[0].mxu0
  %1386 = vmatprep.mubr.f32.mxu0 0.0
  %1387 = vmatmul.mubr.f32.gmra.mrb[0].mxu0 %v568
  %v1388 = vpop.f32.mrb[0].mxu0
  %v1389 = vadd.f32 %v949, %v1388
  %v1390 = vpop.f32.mrb[0].mxu0
  %1391 = vmatprep.mubr.f32.mxu0 0.0
  %1392 = vmatmul.mubr.f32.gmra.mrb[0].mxu0 %v571
  %v1393 = vpop.f32.mrb[0].mxu0
  %v1394 = vadd.f32 %v954, %v1393
  %v1395 = vpop.f32.mrb[0].mxu0
  %1396 = vmatprep.mubr.f32.mxu0 0.0
  %1397 = vmatmul.mubr.f32.gmra.mrb[0].mxu0 %v574
  %v1398 = vpop.f32.mrb[0].mxu0
  %v1399 = vadd.f32 %v959, %v1398
  %v1400 = vpop.f32.mrb[0].mxu0
  %1401 = vmatprep.mubr.f32.mxu0 0.0
  %1402 = vmatmul.mubr.f32.gmra.mrb[0].mxu0 %v577
  %v1403 = vpop.f32.mrb[0].mxu0
  %v1404 = vadd.f32 %v964, %v1403
  %v1405 = vpop.f32.mrb[0].mxu0
  %1406 = vmatprep.mubr.f32.mxu0 0.0
  %1407 = vmatmul.mubr.f32.gmra.mrb[0].mxu0 %v580
  %v1408 = vpop.f32.mrb[0].mxu0
  %v1409 = vadd.f32 %v969, %v1408
  %v1410 = vpop.f32.mrb[0].mxu0
  %1411 = vmatprep.mubr.f32.mxu0 0.0
  %1412 = vmatmul.mubr.f32.gmra.mrb[0].mxu0 %v583
  %v1413 = vpop.f32.mrb[0].mxu0
  %v1414 = vadd.f32 %v974, %v1413
  %v1415 = vpop.f32.mrb[0].mxu0
  %1416 = vmatprep.mubr.f32.mxu0 0.0
  %1417 = vmatmul.mubr.f32.gmra.mrb[0].mxu0 %v586
  %v1418 = vpop.f32.mrb[0].mxu0
  %v1419 = vadd.f32 %v979, %v1418
  %v1420 = vpop.f32.mrb[0].mxu0
  %1421 = vmatprep.mubr.f32.mxu0 0.0
  %1422 = vmatmul.mubr.f32.gmra.mrb[0].mxu0 %v589
  %v1423 = vpop.f32.mrb[0].mxu0
  %v1424 = vadd.f32 %v984, %v1423
  %v1425 = vpop.f32.mrb[0].mxu0
  %1426 = vmatprep.mubr.f32.mxu0 0.0
  %1427 = vmatmul.mubr.f32.gmra.mrb[0].mxu0 %v592
  %v1428 = vpop.f32.mrb[0].mxu0
  %v1429 = vadd.f32 %v989, %v1428
  %v1430 = vpop.f32.mrb[0].mxu0
  %1431 = vmatprep.mubr.f32.mxu0 0.0
  %1432 = vmatmul.mubr.f32.gmra.mrb[0].mxu0 %v595
  %v1433 = vpop.f32.mrb[0].mxu0
  %v1434 = vadd.f32 %v994, %v1433
  %v1435 = vpop.f32.mrb[0].mxu0
  %1436 = vmatprep.mubr.f32.mxu0 0.0
  %1437 = vmatmul.mubr.f32.gmra.mrb[0].mxu0 %v598
  %v1438 = vpop.f32.mrb[0].mxu0
  %v1439 = vadd.f32 %v999, %v1438
  %v1440 = vpop.f32.mrb[0].mxu0
  %1441 = vmatprep.mubr.f32.mxu0 0.0
  %1442 = vmatmul.mubr.f32.gmra.mrb[0].mxu0 %v601
  %v1443 = vpop.f32.mrb[0].mxu0
  %v1444 = vadd.f32 %v1004, %v1443
  %v1445 = vpop.f32.mrb[0].mxu0
  %1446 = vmatprep.mubr.f32.mxu0 0.0
  %1447 = vmatmul.mubr.f32.gmra.mrb[0].mxu0 %v604
  %v1448 = vpop.f32.mrb[0].mxu0
  %v1449 = vadd.f32 %v1009, %v1448
  %v1450 = vpop.f32.mrb[0].mxu0
  %1451 = vmatprep.mubr.f32.mxu0 0.0
  %1452 = vmatmul.mubr.f32.gmra.mrb[0].mxu0 %v607
  %v1453 = vpop.f32.mrb[0].mxu0
  %v1454 = vadd.f32 %v1014, %v1453
  %v1455 = vpop.f32.mrb[0].mxu0
  %1456 = vmatprep.mubr.f32.mxu0 0.0
  %1457 = vmatmul.mubr.f32.gmra.mrb[0].mxu0 %v610
  %v1458 = vpop.f32.mrb[0].mxu0
  %v1459 = vadd.f32 %v1019, %v1458
  %v1460 = vpop.f32.mrb[0].mxu0
  %1461 = vmatprep.mubr.f32.mxu0 0.0
  %1462 = vmatmul.mubr.f32.gmra.mrb[0].mxu0 %v613
  %v1463 = vpop.f32.mrb[0].mxu0
  %v1464 = vadd.f32 %v1024, %v1463
  %v1465 = vpop.f32.mrb[0].mxu0
  %1466 = vmatprep.mubr.f32.mxu0 0.0
  %1467 = vmatmul.mubr.f32.gmra.mrb[0].mxu0 %v616
  %v1468 = vpop.f32.mrb[0].mxu0
  %v1469 = vadd.f32 %v1029, %v1468
  %v1470 = vpop.f32.mrb[0].mxu0
  %1471 = vmatprep.mubr.f32.mxu0 0.0
  %1472 = vmatmul.mubr.f32.gmra.mrb[0].mxu0 %v619
  %v1473 = vpop.f32.mrb[0].mxu0
  %v1474 = vadd.f32 %v1034, %v1473
  %v1475 = vpop.f32.mrb[0].mxu0
  %1476 = vmatprep.mubr.f32.mxu0 0.0
  %1477 = vmatmul.mubr.f32.gmra.mrb[0].mxu0 %v622
  %v1478 = vpop.f32.mrb[0].mxu0
  %v1479 = vadd.f32 %v1039, %v1478
  %v1480 = vpop.f32.mrb[0].mxu0
  %1481 = vmatprep.mubr.f32.mxu0 0.0
  %1482 = vmatmul.mubr.f32.gmra.mrb[0].mxu0 %v625
  %v1483 = vpop.f32.mrb[0].mxu0
  %v1484 = vadd.f32 %v1044, %v1483
  %v1485 = vpop.f32.mrb[0].mxu0
  %1486 = vmatprep.mubr.f32.mxu0 0.0
  %1487 = vmatmul.mubr.f32.gmra.mrb[0].mxu0 %v628
  %v1488 = vpop.f32.mrb[0].mxu0
  %v1489 = vadd.f32 %v1049, %v1488
  %v1490 = vpop.f32.mrb[0].mxu0
  %1491 = vmatprep.mubr.f32.mxu0 0.0
  %1492 = vmatmul.mubr.f32.gmra.mrb[0].mxu0 %v631
  %v1493 = vpop.f32.mrb[0].mxu0
  %v1494 = vadd.f32 %v1054, %v1493
  %v1495 = vpop.f32.mrb[0].mxu0
  %1496 = vmatprep.mubr.f32.mxu0 0.0
  %1497 = vmatmul.mubr.f32.gmra.mrb[0].mxu0 %v634
  %v1498 = vpop.f32.mrb[0].mxu0
  %v1499 = vadd.f32 %v1059, %v1498
  %v1500 = vpop.f32.mrb[0].mxu0
  %1501 = vmatprep.mubr.f32.mxu0 0.0
  %1502 = vmatmul.mubr.f32.gmra.mrb[0].mxu0 %v637
  %v1503 = vpop.f32.mrb[0].mxu0
  %v1504 = vadd.f32 %v1064, %v1503
  %v1505 = vpop.f32.mrb[0].mxu0
  %1506 = vmatprep.mubr.f32.mxu0 0.0
  %1507 = vmatmul.mubr.f32.gmra.mrb[0].mxu0 %v640
  %v1508 = vpop.f32.mrb[0].mxu0
  %v1509 = vadd.f32 %v1069, %v1508
  %v1510 = vpop.f32.mrb[0].mxu0
  %1511 = vmatprep.mubr.f32.mxu0 0.0
  %1512 = vmatmul.mubr.f32.gmra.mrb[0].mxu0 %v643
  %v1513 = vpop.f32.mrb[0].mxu0
  %v1514 = vadd.f32 %v1074, %v1513
  %v1515 = vpop.f32.mrb[0].mxu0
  %1516 = vmatprep.mubr.f32.mxu0 0.0
  %1517 = vmatmul.mubr.f32.gmra.mrb[0].mxu0 %v646
  %v1518 = vpop.f32.mrb[0].mxu0
  %v1519 = vadd.f32 %v1079, %v1518
  %v1520 = vpop.f32.mrb[0].mxu0
  %1521 = vmatprep.mubr.f32.mxu0 0.0
  %1522 = vmatmul.mubr.f32.gmra.mrb[0].mxu0 %v649
  %v1523 = vpop.f32.mrb[0].mxu0
  %v1524 = vadd.f32 %v1084, %v1523
  %v1525 = vpop.f32.mrb[0].mxu0
  %1526 = vmatprep.mubr.f32.mxu0 0.0
  %1527 = vmatmul.mubr.f32.gmra.mrb[0].mxu0 %v652
  %v1528 = vpop.f32.mrb[0].mxu0
  %v1529 = vadd.f32 %v1089, %v1528
  %v1530 = vpop.f32.mrb[0].mxu0
  %1531 = vmatprep.mubr.f32.mxu0 0.0
  %1532 = vmatmul.mubr.f32.gmra.mrb[0].mxu0 %v655
  %v1533 = vpop.f32.mrb[0].mxu0
  %v1534 = vadd.f32 %v1094, %v1533
  %v1535 = vpop.f32.mrb[0].mxu0
  %1536 = vmatprep.mubr.f32.mxu0 0.0
  %1537 = vmatmul.mubr.f32.gmra.mrb[0].mxu0 %v658
  %v1538 = vpop.f32.mrb[0].mxu0
  %v1539 = vadd.f32 %v1099, %v1538
  %v1540 = vpop.f32.mrb[0].mxu0
  %1541 = vmatprep.mubr.f32.mxu0 0.0
  %1542 = vmatmul.mubr.f32.gmra.mrb[0].mxu0 %v661
  %v1543 = vpop.f32.mrb[0].mxu0
  %v1544 = vadd.f32 %v1104, %v1543
  %v1545 = vpop.f32.mrb[0].mxu0
  %1546 = vdwg.mxu0
  %v1547 = vadd.f32 %v362, %v1174
  %v1548 = vadd.f32 %v363, %v1179
  %v1549 = vadd.f32 %v364, %v1184
  %v1550 = vadd.f32 %v365, %v1189
  %v1551 = vadd.f32 %v366, %v1194
  %v1552 = vadd.f32 %v367, %v1199
  %v1553 = vadd.f32 %v368, %v1204
  %v1554 = vadd.f32 %v369, %v1209
  %v1555 = vadd.f32 %v370, %v1214
  %v1556 = vadd.f32 %v371, %v1219
  %v1557 = vadd.f32 %v372, %v1224
  %v1558 = vadd.f32 %v373, %v1229
  %v1559 = vadd.f32 %v374, %v1234
  %v1560 = vadd.f32 %v375, %v1239
  %v1561 = vadd.f32 %v376, %v1244
  %v1562 = vadd.f32 %v377, %v1249
  %v1563 = vadd.f32 %v378, %v1254
  %v1564 = vadd.f32 %v379, %v1259
  %v1565 = vadd.f32 %v380, %v1264
  %v1566 = vadd.f32 %v381, %v1269
  %v1567 = vadd.f32 %v382, %v1274
  %v1568 = vadd.f32 %v383, %v1279
  %v1569 = vadd.f32 %v384, %v1284
  %v1570 = vadd.f32 %v385, %v1289
  %v1571 = vadd.f32 %v386, %v1294
  %v1572 = vadd.f32 %v387, %v1299
  %v1573 = vadd.f32 %v388, %v1304
  %v1574 = vadd.f32 %v389, %v1309
  %v1575 = vadd.f32 %v390, %v1314
  %v1576 = vadd.f32 %v391, %v1319
  %v1577 = vadd.f32 %v392, %v1324
  %v1578 = vadd.f32 %v393, %v1329
  %v1579 = vadd.f32 %v394, %v1334
  %v1580 = vadd.f32 %v395, %v1339
  %v1581 = vadd.f32 %v396, %v1344
  %v1582 = vadd.f32 %v397, %v1349
  %v1583 = vadd.f32 %v398, %v1354
  %v1584 = vadd.f32 %v399, %v1359
  %v1585 = vadd.f32 %v400, %v1364
  %v1586 = vadd.f32 %v401, %v1369
  %v1587 = vadd.f32 %v402, %v1374
  %v1588 = vadd.f32 %v403, %v1379
  %v1589 = vadd.f32 %v404, %v1384
  %v1590 = vadd.f32 %v405, %v1389
  %v1591 = vadd.f32 %v406, %v1394
  %v1592 = vadd.f32 %v407, %v1399
  %v1593 = vadd.f32 %v408, %v1404
  %v1594 = vadd.f32 %v409, %v1409
  %v1595 = vadd.f32 %v410, %v1414
  %v1596 = vadd.f32 %v411, %v1419
  %v1597 = vadd.f32 %v412, %v1424
  %v1598 = vadd.f32 %v413, %v1429
  %v1599 = vadd.f32 %v414, %v1434
  %v1600 = vadd.f32 %v415, %v1439
  %v1601 = vadd.f32 %v416, %v1444
  %v1602 = vadd.f32 %v417, %v1449
  %v1603 = vadd.f32 %v418, %v1454
  %v1604 = vadd.f32 %v419, %v1459
  %v1605 = vadd.f32 %v420, %v1464
  %v1606 = vadd.f32 %v421, %v1469
  %v1607 = vadd.f32 %v422, %v1474
  %v1608 = vadd.f32 %v423, %v1479
  %v1609 = vadd.f32 %v424, %v1484
  %v1610 = vadd.f32 %v425, %v1489
  %v1611 = vadd.f32 %v426, %v1494
  %v1612 = vadd.f32 %v427, %v1499
  %v1613 = vadd.f32 %v428, %v1504
  %v1614 = vadd.f32 %v429, %v1509
  %v1615 = vadd.f32 %v430, %v1514
  %v1616 = vadd.f32 %v431, %v1519
  %v1617 = vadd.f32 %v432, %v1524
  %v1618 = vadd.f32 %v433, %v1529
  %v1619 = vadd.f32 %v434, %v1534
  %v1620 = vadd.f32 %v435, %v1539
  %v1621 = vadd.f32 %v436, %v1544
  %vm1622 = vcmask 7168
  %1623 = vst.msk [vmem:[#allocation2] sm:$0xff] %vm1622, %v1547
  %1624 = vst.msk [vmem:[#allocation2 + $0x8] sm:$0xff] %vm1622, %v1548
  %1625 = vst.msk [vmem:[#allocation2 + $0x10] sm:$0xff] %vm1622, %v1549
  %1626 = vst.msk [vmem:[#allocation2 + $0x18] sm:$0xff] %vm1622, %v1550
  %1627 = vst.msk [vmem:[#allocation2 + $0x20] sm:$0xff] %vm1622, %v1551
  %1628 = vst.msk [vmem:[#allocation2 + $0x28] sm:$0xff] %vm1622, %v1552
  %1629 = vst.msk [vmem:[#allocation2 + $0x30] sm:$0xff] %vm1622, %v1553
  %1630 = vst.msk [vmem:[#allocation2 + $0x38] sm:$0xff] %vm1622, %v1554
  %1631 = vst.msk [vmem:[#allocation2 + $0x40] sm:$0xff] %vm1622, %v1555
  %1632 = vst.msk [vmem:[#allocation2 + $0x48] sm:$0xff] %vm1622, %v1556
  %1633 = vst.msk [vmem:[#allocation2 + $0x50] sm:$0xff] %vm1622, %v1557
  %1634 = vst.msk [vmem:[#allocation2 + $0x58] sm:$0xff] %vm1622, %v1558
  %1635 = vst.msk [vmem:[#allocation2 + $0x60] sm:$0xff] %vm1622, %v1559
  %1636 = vst.msk [vmem:[#allocation2 + $0x68] sm:$0xff] %vm1622, %v1560
  %1637 = vst.msk [vmem:[#allocation2 + $0x70] sm:$0xff] %vm1622, %v1561
  %1638 = vst.msk [vmem:[#allocation2 + $0x78] sm:$0xff] %vm1622, %v1562
  %1639 = vst.msk [vmem:[#allocation2 + $0x80] sm:$0xff] %vm1622, %v1563
  %1640 = vst.msk [vmem:[#allocation2 + $0x88] sm:$0xff] %vm1622, %v1564
  %1641 = vst.msk [vmem:[#allocation2 + $0x90] sm:$0xff] %vm1622, %v1565
  %1642 = vst.msk [vmem:[#allocation2 + $0x98] sm:$0xff] %vm1622, %v1566
  %1643 = vst.msk [vmem:[#allocation2 + $0xa0] sm:$0xff] %vm1622, %v1567
  %1644 = vst.msk [vmem:[#allocation2 + $0xa8] sm:$0xff] %vm1622, %v1568
  %1645 = vst.msk [vmem:[#allocation2 + $0xb0] sm:$0xff] %vm1622, %v1569
  %1646 = vst.msk [vmem:[#allocation2 + $0xb8] sm:$0xff] %vm1622, %v1570
  %1647 = vst.msk [vmem:[#allocation2 + $0xc0] sm:$0xff] %vm1622, %v1571
  %1648 = vst.msk [vmem:[#allocation2 + $0xc8] sm:$0xff] %vm1622, %v1572
  %1649 = vst.msk [vmem:[#allocation2 + $0xd0] sm:$0xff] %vm1622, %v1573
  %1650 = vst.msk [vmem:[#allocation2 + $0xd8] sm:$0xff] %vm1622, %v1574
  %1651 = vst.msk [vmem:[#allocation2 + $0xe0] sm:$0xff] %vm1622, %v1575
  %1652 = vst.msk [vmem:[#allocation2 + $0xe8] sm:$0xff] %vm1622, %v1576
  %1653 = vst.msk [vmem:[#allocation2 + $0xf0] sm:$0xff] %vm1622, %v1577
  %1654 = vst.msk [vmem:[#allocation2 + $0xf8] sm:$0xff] %vm1622, %v1578
  %1655 = vst.msk [vmem:[#allocation2 + $0x100] sm:$0xff] %vm1622, %v1579
  %1656 = vst.msk [vmem:[#allocation2 + $0x108] sm:$0xff] %vm1622, %v1580
  %1657 = vst.msk [vmem:[#allocation2 + $0x110] sm:$0xff] %vm1622, %v1581
  %1658 = vst.msk [vmem:[#allocation2 + $0x118] sm:$0xff] %vm1622, %v1582
  %1659 = vst.msk [vmem:[#allocation2 + $0x120] sm:$0xff] %vm1622, %v1583
  %1660 = vst.msk [vmem:[#allocation2 + $0x128] sm:$0xff] %vm1622, %v1584
  %1661 = vst.msk [vmem:[#allocation2 + $0x130] sm:$0xff] %vm1622, %v1585
  %1662 = vst.msk [vmem:[#allocation2 + $0x138] sm:$0xff] %vm1622, %v1586
  %1663 = vst.msk [vmem:[#allocation2 + $0x140] sm:$0xff] %vm1622, %v1587
  %1664 = vst.msk [vmem:[#allocation2 + $0x148] sm:$0xff] %vm1622, %v1588
  %1665 = vst.msk [vmem:[#allocation2 + $0x150] sm:$0xff] %vm1622, %v1589
  %1666 = vst.msk [vmem:[#allocation2 + $0x158] sm:$0xff] %vm1622, %v1590
  %1667 = vst.msk [vmem:[#allocation2 + $0x160] sm:$0xff] %vm1622, %v1591
  %1668 = vst.msk [vmem:[#allocation2 + $0x168] sm:$0xff] %vm1622, %v1592
  %1669 = vst.msk [vmem:[#allocation2 + $0x170] sm:$0xff] %vm1622, %v1593
  %1670 = vst.msk [vmem:[#allocation2 + $0x178] sm:$0xff] %vm1622, %v1594
  %1671 = vst.msk [vmem:[#allocation2 + $0x180] sm:$0xff] %vm1622, %v1595
  %1672 = vst.msk [vmem:[#allocation2 + $0x188] sm:$0xff] %vm1622, %v1596
  %1673 = vst.msk [vmem:[#allocation2 + $0x190] sm:$0xff] %vm1622, %v1597
  %1674 = vst.msk [vmem:[#allocation2 + $0x198] sm:$0xff] %vm1622, %v1598
  %1675 = vst.msk [vmem:[#allocation2 + $0x1a0] sm:$0xff] %vm1622, %v1599
  %1676 = vst.msk [vmem:[#allocation2 + $0x1a8] sm:$0xff] %vm1622, %v1600
  %1677 = vst.msk [vmem:[#allocation2 + $0x1b0] sm:$0xff] %vm1622, %v1601
  %1678 = vst.msk [vmem:[#allocation2 + $0x1b8] sm:$0xff] %vm1622, %v1602
  %1679 = vst.msk [vmem:[#allocation2 + $0x1c0] sm:$0xff] %vm1622, %v1603
  %1680 = vst.msk [vmem:[#allocation2 + $0x1c8] sm:$0xff] %vm1622, %v1604
  %1681 = vst.msk [vmem:[#allocation2 + $0x1d0] sm:$0xff] %vm1622, %v1605
  %1682 = vst.msk [vmem:[#allocation2 + $0x1d8] sm:$0xff] %vm1622, %v1606
  %1683 = vst.msk [vmem:[#allocation2 + $0x1e0] sm:$0xff] %vm1622, %v1607
  %1684 = vst.msk [vmem:[#allocation2 + $0x1e8] sm:$0xff] %vm1622, %v1608
  %1685 = vst.msk [vmem:[#allocation2 + $0x1f0] sm:$0xff] %vm1622, %v1609
  %1686 = vst.msk [vmem:[#allocation2 + $0x1f8] sm:$0xff] %vm1622, %v1610
  %1687 = vst.msk [vmem:[#allocation2 + $0x200] sm:$0xff] %vm1622, %v1611
  %1688 = vst.msk [vmem:[#allocation2 + $0x208] sm:$0xff] %vm1622, %v1612
  %1689 = vst.msk [vmem:[#allocation2 + $0x210] sm:$0xff] %vm1622, %v1613
  %1690 = vst.msk [vmem:[#allocation2 + $0x218] sm:$0xff] %vm1622, %v1614
  %1691 = vst.msk [vmem:[#allocation2 + $0x220] sm:$0xff] %vm1622, %v1615
  %1692 = vst.msk [vmem:[#allocation2 + $0x228] sm:$0xff] %vm1622, %v1616
  %1693 = vst.msk [vmem:[#allocation2 + $0x230] sm:$0xff] %vm1622, %v1617
  %1694 = vst.msk [vmem:[#allocation2 + $0x238] sm:$0xff] %vm1622, %v1618
  %1695 = vst.msk [vmem:[#allocation2 + $0x240] sm:$0xff] %vm1622, %v1619
  %1696 = vst.msk [vmem:[#allocation2 + $0x248] sm:$0xff] %vm1622, %v1620
  %1697 = vst.msk [vmem:[#allocation2 + $0x250] sm:$0xff] %vm1622, %v1621
  // Predicated region
  $region18: #{tpu_custom_call.1} parent=0 // pred_check
    %p1698 = pneg %p15
  $region19: #{tpu_custom_call.1} parent=0 // pred_check_branch
    %1700 = sbr.rel (%p1698) target = $region21
  $region20: #{tpu_custom_call.1} parent=0 // pred_region
    %v1701 = vld [vmem:[#allocation2] sm:$0xff]
    %v1702 = vld [vmem:[#allocation2 + $0x8] sm:$0xff]
    %v1703 = vld [vmem:[#allocation2 + $0x10] sm:$0xff]
    %v1704 = vld [vmem:[#allocation2 + $0x18] sm:$0xff]
    %v1705 = vld [vmem:[#allocation2 + $0x20] sm:$0xff]
    %v1706 = vld [vmem:[#allocation2 + $0x28] sm:$0xff]
    %v1707 = vld [vmem:[#allocation2 + $0x30] sm:$0xff]
    %v1708 = vld [vmem:[#allocation2 + $0x38] sm:$0xff]
    %v1709 = vld [vmem:[#allocation2 + $0x40] sm:$0xff]
    %v1710 = vld [vmem:[#allocation2 + $0x48] sm:$0xff]
    %v1711 = vld [vmem:[#allocation2 + $0x50] sm:$0xff]
    %v1712 = vld [vmem:[#allocation2 + $0x58] sm:$0xff]
    %v1713 = vld [vmem:[#allocation2 + $0x60] sm:$0xff]
    %v1714 = vld [vmem:[#allocation2 + $0x68] sm:$0xff]
    %v1715 = vld [vmem:[#allocation2 + $0x70] sm:$0xff]
    %v1716 = vld [vmem:[#allocation2 + $0x78] sm:$0xff]
    %v1717 = vld [vmem:[#allocation2 + $0x80] sm:$0xff]
    %v1718 = vld [vmem:[#allocation2 + $0x88] sm:$0xff]
    %v1719 = vld [vmem:[#allocation2 + $0x90] sm:$0xff]
    %v1720 = vld [vmem:[#allocation2 + $0x98] sm:$0xff]
    %v1721 = vld [vmem:[#allocation2 + $0xa0] sm:$0xff]
    %v1722 = vld [vmem:[#allocation2 + $0xa8] sm:$0xff]
    %v1723 = vld [vmem:[#allocation2 + $0xb0] sm:$0xff]
    %v1724 = vld [vmem:[#allocation2 + $0xb8] sm:$0xff]
    %v1725 = vld [vmem:[#allocation2 + $0xc0] sm:$0xff]
    %v1726 = vld [vmem:[#allocation2 + $0xc8] sm:$0xff]
    %v1727 = vld [vmem:[#allocation2 + $0xd0] sm:$0xff]
    %v1728 = vld [vmem:[#allocation2 + $0xd8] sm:$0xff]
    %v1729 = vld [vmem:[#allocation2 + $0xe0] sm:$0xff]
    %v1730 = vld [vmem:[#allocation2 + $0xe8] sm:$0xff]
    %v1731 = vld [vmem:[#allocation2 + $0xf0] sm:$0xff]
    %v1732 = vld [vmem:[#allocation2 + $0xf8] sm:$0xff]
    %v1733 = vld [vmem:[#allocation2 + $0x100] sm:$0xff]
    %v1734 = vld [vmem:[#allocation2 + $0x108] sm:$0xff]
    %v1735 = vld [vmem:[#allocation2 + $0x110] sm:$0xff]
    %v1736 = vld [vmem:[#allocation2 + $0x118] sm:$0xff]
    %v1737 = vld [vmem:[#allocation2 + $0x120] sm:$0xff]
    %v1738 = vld [vmem:[#allocation2 + $0x128] sm:$0xff]
    %v1739 = vld [vmem:[#allocation2 + $0x130] sm:$0xff]
    %v1740 = vld [vmem:[#allocation2 + $0x138] sm:$0xff]
    %v1741 = vld [vmem:[#allocation2 + $0x140] sm:$0xff]
    %v1742 = vld [vmem:[#allocation2 + $0x148] sm:$0xff]
    %v1743 = vld [vmem:[#allocation2 + $0x150] sm:$0xff]
    %v1744 = vld [vmem:[#allocation2 + $0x158] sm:$0xff]
    %v1745 = vld [vmem:[#allocation2 + $0x160] sm:$0xff]
    %v1746 = vld [vmem:[#allocation2 + $0x168] sm:$0xff]
    %v1747 = vld [vmem:[#allocation2 + $0x170] sm:$0xff]
    %v1748 = vld [vmem:[#allocation2 + $0x178] sm:$0xff]
    %v1749 = vld [vmem:[#allocation2 + $0x180] sm:$0xff]
    %v1750 = vld [vmem:[#allocation2 + $0x188] sm:$0xff]
    %v1751 = vld [vmem:[#allocation2 + $0x190] sm:$0xff]
    %v1752 = vld [vmem:[#allocation2 + $0x198] sm:$0xff]
    %v1753 = vld [vmem:[#allocation2 + $0x1a0] sm:$0xff]
    %v1754 = vld [vmem:[#allocation2 + $0x1a8] sm:$0xff]
    %v1755 = vld [vmem:[#allocation2 + $0x1b0] sm:$0xff]
    %v1756 = vld [vmem:[#allocation2 + $0x1b8] sm:$0xff]
    %v1757 = vld [vmem:[#allocation2 + $0x1c0] sm:$0xff]
    %v1758 = vld [vmem:[#allocation2 + $0x1c8] sm:$0xff]
    %v1759 = vld [vmem:[#allocation2 + $0x1d0] sm:$0xff]
    %v1760 = vld [vmem:[#allocation2 + $0x1d8] sm:$0xff]
    %v1761 = vld [vmem:[#allocation2 + $0x1e0] sm:$0xff]
    %v1762 = vld [vmem:[#allocation2 + $0x1e8] sm:$0xff]
    %v1763 = vld [vmem:[#allocation2 + $0x1f0] sm:$0xff]
    %v1764 = vld [vmem:[#allocation2 + $0x1f8] sm:$0xff]
    %v1765 = vld [vmem:[#allocation2 + $0x200] sm:$0xff]
    %v1766 = vld [vmem:[#allocation2 + $0x208] sm:$0xff]
    %v1767 = vld [vmem:[#allocation2 + $0x210] sm:$0xff]
    %v1768 = vld [vmem:[#allocation2 + $0x218] sm:$0xff]
    %v1769 = vld [vmem:[#allocation2 + $0x220] sm:$0xff]
    %v1770 = vld [vmem:[#allocation2 + $0x228] sm:$0xff]
    %v1771 = vld [vmem:[#allocation2 + $0x230] sm:$0xff]
    %v1772 = vld [vmem:[#allocation2 + $0x238] sm:$0xff]
    %v1773 = vld [vmem:[#allocation2 + $0x240] sm:$0xff]
    %v1774 = vld [vmem:[#allocation2 + $0x248] sm:$0xff]
    %v1775 = vld [vmem:[#allocation2 + $0x250] sm:$0xff]
    %s1776 = sld [smem:[#allocation3]]
    %v1777 = vstv %s1776
    %v1778 = vadd.f32 %v1701, %v1777
    %v1779 = vadd.f32 %v1702, %v1777
    %v1780 = vadd.f32 %v1703, %v1777
    %v1781 = vadd.f32 %v1704, %v1777
    %v1782 = vadd.f32 %v1705, %v1777
    %v1783 = vadd.f32 %v1706, %v1777
    %v1784 = vadd.f32 %v1707, %v1777
    %v1785 = vadd.f32 %v1708, %v1777
    %v1786 = vadd.f32 %v1709, %v1777
    %v1787 = vadd.f32 %v1710, %v1777
    %v1788 = vadd.f32 %v1711, %v1777
    %v1789 = vadd.f32 %v1712, %v1777
    %v1790 = vadd.f32 %v1713, %v1777
    %v1791 = vadd.f32 %v1714, %v1777
    %v1792 = vadd.f32 %v1715, %v1777
    %v1793 = vadd.f32 %v1716, %v1777
    %v1794 = vadd.f32 %v1717, %v1777
    %v1795 = vadd.f32 %v1718, %v1777
    %v1796 = vadd.f32 %v1719, %v1777
    %v1797 = vadd.f32 %v1720, %v1777
    %v1798 = vadd.f32 %v1721, %v1777
    %v1799 = vadd.f32 %v1722, %v1777
    %v1800 = vadd.f32 %v1723, %v1777
    %v1801 = vadd.f32 %v1724, %v1777
    %v1802 = vadd.f32 %v1725, %v1777
    %v1803 = vadd.f32 %v1726, %v1777
    %v1804 = vadd.f32 %v1727, %v1777
    %v1805 = vadd.f32 %v1728, %v1777
    %v1806 = vadd.f32 %v1729, %v1777
    %v1807 = vadd.f32 %v1730, %v1777
    %v1808 = vadd.f32 %v1731, %v1777
    %v1809 = vadd.f32 %v1732, %v1777
    %v1810 = vadd.f32 %v1733, %v1777
    %v1811 = vadd.f32 %v1734, %v1777
    %v1812 = vadd.f32 %v1735, %v1777
    %v1813 = vadd.f32 %v1736, %v1777
    %v1814 = vadd.f32 %v1737, %v1777
    %v1815 = vadd.f32 %v1738, %v1777
    %v1816 = vadd.f32 %v1739, %v1777
    %v1817 = vadd.f32 %v1740, %v1777
    %v1818 = vadd.f32 %v1741, %v1777
    %v1819 = vadd.f32 %v1742, %v1777
    %v1820 = vadd.f32 %v1743, %v1777
    %v1821 = vadd.f32 %v1744, %v1777
    %v1822 = vadd.f32 %v1745, %v1777
    %v1823 = vadd.f32 %v1746, %v1777
    %v1824 = vadd.f32 %v1747, %v1777
    %v1825 = vadd.f32 %v1748, %v1777
    %v1826 = vadd.f32 %v1749, %v1777
    %v1827 = vadd.f32 %v1750, %v1777
    %v1828 = vadd.f32 %v1751, %v1777
    %v1829 = vadd.f32 %v1752, %v1777
    %v1830 = vadd.f32 %v1753, %v1777
    %v1831 = vadd.f32 %v1754, %v1777
    %v1832 = vadd.f32 %v1755, %v1777
    %v1833 = vadd.f32 %v1756, %v1777
    %v1834 = vadd.f32 %v1757, %v1777
    %v1835 = vadd.f32 %v1758, %v1777
    %v1836 = vadd.f32 %v1759, %v1777
    %v1837 = vadd.f32 %v1760, %v1777
    %v1838 = vadd.f32 %v1761, %v1777
    %v1839 = vadd.f32 %v1762, %v1777
    %v1840 = vadd.f32 %v1763, %v1777
    %v1841 = vadd.f32 %v1764, %v1777
    %v1842 = vadd.f32 %v1765, %v1777
    %v1843 = vadd.f32 %v1766, %v1777
    %v1844 = vadd.f32 %v1767, %v1777
    %v1845 = vadd.f32 %v1768, %v1777
    %v1846 = vadd.f32 %v1769, %v1777
    %v1847 = vadd.f32 %v1770, %v1777
    %v1848 = vadd.f32 %v1771, %v1777
    %v1849 = vadd.f32 %v1772, %v1777
    %v1850 = vadd.f32 %v1773, %v1777
    %v1851 = vadd.f32 %v1774, %v1777
    %v1852 = vadd.f32 %v1775, %v1777
    %1853 = vst.msk [vmem:[%s3] sm:$0xff] %vm1622, %v1778
    %1854 = vst.msk [vmem:[%s3 + $0x8] sm:$0xff] %vm1622, %v1779
    %1855 = vst.msk [vmem:[%s3 + $0x10] sm:$0xff] %vm1622, %v1780
    %1856 = vst.msk [vmem:[%s3 + $0x18] sm:$0xff] %vm1622, %v1781
    %1857 = vst.msk [vmem:[%s3 + $0x20] sm:$0xff] %vm1622, %v1782
    %1858 = vst.msk [vmem:[%s3 + $0x28] sm:$0xff] %vm1622, %v1783
    %1859 = vst.msk [vmem:[%s3 + $0x30] sm:$0xff] %vm1622, %v1784
    %1860 = vst.msk [vmem:[%s3 + $0x38] sm:$0xff] %vm1622, %v1785
    %1861 = vst.msk [vmem:[%s3 + $0x40] sm:$0xff] %vm1622, %v1786
    %1862 = vst.msk [vmem:[%s3 + $0x48] sm:$0xff] %vm1622, %v1787
    %1863 = vst.msk [vmem:[%s3 + $0x50] sm:$0xff] %vm1622, %v1788
    %1864 = vst.msk [vmem:[%s3 + $0x58] sm:$0xff] %vm1622, %v1789
    %1865 = vst.msk [vmem:[%s3 + $0x60] sm:$0xff] %vm1622, %v1790
    %1866 = vst.msk [vmem:[%s3 + $0x68] sm:$0xff] %vm1622, %v1791
    %1867 = vst.msk [vmem:[%s3 + $0x70] sm:$0xff] %vm1622, %v1792
    %1868 = vst.msk [vmem:[%s3 + $0x78] sm:$0xff] %vm1622, %v1793
    %1869 = vst.msk [vmem:[%s3 + $0x80] sm:$0xff] %vm1622, %v1794
    %1870 = vst.msk [vmem:[%s3 + $0x88] sm:$0xff] %vm1622, %v1795
    %1871 = vst.msk [vmem:[%s3 + $0x90] sm:$0xff] %vm1622, %v1796
    %1872 = vst.msk [vmem:[%s3 + $0x98] sm:$0xff] %vm1622, %v1797
    %1873 = vst.msk [vmem:[%s3 + $0xa0] sm:$0xff] %vm1622, %v1798
    %1874 = vst.msk [vmem:[%s3 + $0xa8] sm:$0xff] %vm1622, %v1799
    %1875 = vst.msk [vmem:[%s3 + $0xb0] sm:$0xff] %vm1622, %v1800
    %1876 = vst.msk [vmem:[%s3 + $0xb8] sm:$0xff] %vm1622, %v1801
    %1877 = vst.msk [vmem:[%s3 + $0xc0] sm:$0xff] %vm1622, %v1802
    %1878 = vst.msk [vmem:[%s3 + $0xc8] sm:$0xff] %vm1622, %v1803
    %1879 = vst.msk [vmem:[%s3 + $0xd0] sm:$0xff] %vm1622, %v1804
    %1880 = vst.msk [vmem:[%s3 + $0xd8] sm:$0xff] %vm1622, %v1805
    %1881 = vst.msk [vmem:[%s3 + $0xe0] sm:$0xff] %vm1622, %v1806
    %1882 = vst.msk [vmem:[%s3 + $0xe8] sm:$0xff] %vm1622, %v1807
    %1883 = vst.msk [vmem:[%s3 + $0xf0] sm:$0xff] %vm1622, %v1808
    %1884 = vst.msk [vmem:[%s3 + $0xf8] sm:$0xff] %vm1622, %v1809
    %1885 = vst.msk [vmem:[%s3 + $0x100] sm:$0xff] %vm1622, %v1810
    %1886 = vst.msk [vmem:[%s3 + $0x108] sm:$0xff] %vm1622, %v1811
    %1887 = vst.msk [vmem:[%s3 + $0x110] sm:$0xff] %vm1622, %v1812
    %1888 = vst.msk [vmem:[%s3 + $0x118] sm:$0xff] %vm1622, %v1813
    %1889 = vst.msk [vmem:[%s3 + $0x120] sm:$0xff] %vm1622, %v1814
    %1890 = vst.msk [vmem:[%s3 + $0x128] sm:$0xff] %vm1622, %v1815
    %1891 = vst.msk [vmem:[%s3 + $0x130] sm:$0xff] %vm1622, %v1816
    %1892 = vst.msk [vmem:[%s3 + $0x138] sm:$0xff] %vm1622, %v1817
    %1893 = vst.msk [vmem:[%s3 + $0x140] sm:$0xff] %vm1622, %v1818
    %1894 = vst.msk [vmem:[%s3 + $0x148] sm:$0xff] %vm1622, %v1819
    %1895 = vst.msk [vmem:[%s3 + $0x150] sm:$0xff] %vm1622, %v1820
    %1896 = vst.msk [vmem:[%s3 + $0x158] sm:$0xff] %vm1622, %v1821
    %1897 = vst.msk [vmem:[%s3 + $0x160] sm:$0xff] %vm1622, %v1822
    %1898 = vst.msk [vmem:[%s3 + $0x168] sm:$0xff] %vm1622, %v1823
    %1899 = vst.msk [vmem:[%s3 + $0x170] sm:$0xff] %vm1622, %v1824
    %1900 = vst.msk [vmem:[%s3 + $0x178] sm:$0xff] %vm1622, %v1825
    %1901 = vst.msk [vmem:[%s3 + $0x180] sm:$0xff] %vm1622, %v1826
    %1902 = vst.msk [vmem:[%s3 + $0x188] sm:$0xff] %vm1622, %v1827
    %1903 = vst.msk [vmem:[%s3 + $0x190] sm:$0xff] %vm1622, %v1828
    %1904 = vst.msk [vmem:[%s3 + $0x198] sm:$0xff] %vm1622, %v1829
    %1905 = vst.msk [vmem:[%s3 + $0x1a0] sm:$0xff] %vm1622, %v1830
    %1906 = vst.msk [vmem:[%s3 + $0x1a8] sm:$0xff] %vm1622, %v1831
    %1907 = vst.msk [vmem:[%s3 + $0x1b0] sm:$0xff] %vm1622, %v1832
    %1908 = vst.msk [vmem:[%s3 + $0x1b8] sm:$0xff] %vm1622, %v1833
    %1909 = vst.msk [vmem:[%s3 + $0x1c0] sm:$0xff] %vm1622, %v1834
    %1910 = vst.msk [vmem:[%s3 + $0x1c8] sm:$0xff] %vm1622, %v1835
    %1911 = vst.msk [vmem:[%s3 + $0x1d0] sm:$0xff] %vm1622, %v1836
    %1912 = vst.msk [vmem:[%s3 + $0x1d8] sm:$0xff] %vm1622, %v1837
    %1913 = vst.msk [vmem:[%s3 + $0x1e0] sm:$0xff] %vm1622, %v1838
    %1914 = vst.msk [vmem:[%s3 + $0x1e8] sm:$0xff] %vm1622, %v1839
    %1915 = vst.msk [vmem:[%s3 + $0x1f0] sm:$0xff] %vm1622, %v1840
    %1916 = vst.msk [vmem:[%s3 + $0x1f8] sm:$0xff] %vm1622, %v1841
    %1917 = vst.msk [vmem:[%s3 + $0x200] sm:$0xff] %vm1622, %v1842
    %1918 = vst.msk [vmem:[%s3 + $0x208] sm:$0xff] %vm1622, %v1843
    %1919 = vst.msk [vmem:[%s3 + $0x210] sm:$0xff] %vm1622, %v1844
    %1920 = vst.msk [vmem:[%s3 + $0x218] sm:$0xff] %vm1622, %v1845
    %1921 = vst.msk [vmem:[%s3 + $0x220] sm:$0xff] %vm1622, %v1846
    %1922 = vst.msk [vmem:[%s3 + $0x228] sm:$0xff] %vm1622, %v1847
    %1923 = vst.msk [vmem:[%s3 + $0x230] sm:$0xff] %vm1622, %v1848
    %1924 = vst.msk [vmem:[%s3 + $0x238] sm:$0xff] %vm1622, %v1849
    %1925 = vst.msk [vmem:[%s3 + $0x240] sm:$0xff] %vm1622, %v1850
    %1926 = vst.msk [vmem:[%s3 + $0x248] sm:$0xff] %vm1622, %v1851
    %1927 = vst.msk [vmem:[%s3 + $0x250] sm:$0xff] %vm1622, %v1852
  $region21: #{tpu_custom_call.1} parent=0 // pred_fallthru
    _
  // Predicated region
  $region22: #{tpu_custom_call.1} parent=0 // pred_check
    _
  $region23: #{tpu_custom_call.1} parent=0 // pred_check_branch
    %1929 = sbr.rel (0) target = $region25
  $region24: #{tpu_custom_call.1} parent=0 // pred_region
    _
  $region25: #{tpu_custom_call.1} parent=0 // pred_fallthru
    _
  // Predicated region
  $region26: #{tpu_custom_call.1} parent=0 // pred_check
    _
  $region27: #{tpu_custom_call.1} parent=0 // pred_check_branch
    %1931 = sbr.rel (0) target = $region29
  $region28: #{tpu_custom_call.1} parent=0 // pred_region
    _
  $region29: #{tpu_custom_call.1} parent=0 // pred_fallthru
    _

</llo_original>
